<compile_context>
chip_gen: v7x
topology: tpu7x:2x2x1
jax: 0.10.0
libtpu: 0.0.40
codegen_flags: <defaults>
</compile_context>

<pallas_src>
import functools

import jax
import jax.numpy as jnp
from jax.experimental import pallas as pl
from jax.experimental.pallas import tpu as pltpu


# ---------------------------------------------------------------------------
# Architecture (matches the PyTorch module)
# ---------------------------------------------------------------------------
DT_DIMS = [4, 16, 64, 256, 64, 16, 1]     # dt_layers
H0_DIMS = [1, 16, 64, 256, 64, 16, 1]     # H0_layers
CLS_DIMS = [2, 16, 64, 256, 64, 16, 2]    # class_layers

_LANE = 128            # lane width: output padded to this for dense stores
_SMALL_K = 8           # contraction dims <= this run on the VPU, not the MXU


def _round_up(x, m):
    return (x + m - 1) // m * m


def _cdiv(a, b):
    return (a + b - 1) // b


def _tower_param_shapes(dims):
    """(w, b) shapes per Linear; w is (in, out) (transpose of nn.Linear.weight)."""
    return [((d_in, d_out), (1, d_out)) for d_in, d_out in zip(dims[:-1], dims[1:])]


def _init_tower(key, dims):
    """Deterministic init mimicking PyTorch nn.Linear U(-1/sqrt(in), 1/sqrt(in))."""
    params = []
    for (w_shape, b_shape) in _tower_param_shapes(dims):
        key, kw, kb = jax.random.split(key, 3)
        bound = 1.0 / jnp.sqrt(jnp.float32(w_shape[0]))
        w = jax.random.uniform(kw, w_shape, jnp.float32, -bound, bound)
        b = jax.random.uniform(kb, b_shape, jnp.float32, -bound, bound)
        params.extend([w, b])
    return key, params


# ---------------------------------------------------------------------------
# One-time parameter preprocessing (wrapper-side, numerically exact in f32)
# ---------------------------------------------------------------------------
def _fuse_block_diag(dt_params, h0_params):
    """Merge the dt and H0 towers into one tower with block-diagonal weights."""
    fused = []
    n = len(dt_params) // 2
    for i in range(n):
        wd, bd = dt_params[2 * i], dt_params[2 * i + 1]
        wh, bh = h0_params[2 * i], h0_params[2 * i + 1]
        di, do = wd.shape
        hi, ho = wh.shape
        w = jnp.zeros((di + hi, do + ho), jnp.float32)
        w = w.at[:di, :do].set(wd)
        w = w.at[di:, do:].set(wh)
        b = jnp.concatenate([bd, bh], axis=1)
        fused.extend([w, b])
    return fused


def prepare_params(dt_params, h0_params, cls_params, *,
                   compute_dtype=jnp.bfloat16):
    """Build the single 11-layer parameter chain used by the kernel.

    Do this ONCE at parameter-load time (outside the jitted/hot path):
      1. Block-diagonal fusion of the dt and H0 towers      -> 6 layers.
      2. Fold fused layer 6 (32->2) with classifier layer 1 (2->16) into one
         (32->16) layer (exact: no ReLU between them)       -> 11 layers.
      3. Zero-pad the final layer to 128 output lanes (lane-dense store).
      4. Pre-cast MXU-path weights (K > _SMALL_K) to `compute_dtype`;
         biases and the K=5 VPU-path weight stay f32.
    Returns (flat (w, b, w, b, ...) tuple, n_real_outputs).
    """
    fused = _fuse_block_diag(dt_params, h0_params)
    cls = [p.astype(jnp.float32) for p in cls_params]

    # Fold (32->2) . (2->16) into a single (32->16) layer.
    w6, b6 = fused[-2], fused[-1]
    c1w, c1b = cls[0], cls[1]
    w_fold = jnp.dot(w6, c1w)                  # (32, 16)
    b_fold = jnp.dot(b6, c1w) + c1b            # (1, 16)

    chain = fused[:-2] + [w_fold, b_fold] + cls[2:]

    # Zero-pad the last layer to _LANE outputs for an unmasked lane-dense vst.
    w_last, b_last = chain[-2], chain[-1]
    k_last, n_out = w_last.shape
    chain[-2] = jnp.zeros((k_last, _LANE), jnp.float32).at[:, :n_out].set(w_last)
    chain[-1] = jnp.zeros((1, _LANE), jnp.float32).at[:, :n_out].set(b_last)

    out = []
    for i in range(len(chain) // 2):
        w, b = chain[2 * i], chain[2 * i + 1]
        if w.shape[0] > _SMALL_K:
            w = w.astype(compute_dtype)        # bf16 feed to the MXU
        out.extend([w, b.astype(jnp.float32)])
    return tuple(out), n_out


# ---------------------------------------------------------------------------
# Pallas kernel
# ---------------------------------------------------------------------------
def mlp_kernel(*refs, n_layers):
    # refs = x (tb, 5), 11 x (w, b), out (tb, 128)
    x_ref = refs[0]
    out_ref = refs[-1]
    param_refs = refs[1:-1]

    x = x_ref[...].astype(jnp.float32)         # (tb, 5) = cat(x1, x2)
    for i in range(n_layers):
        w = param_refs[2 * i][...]
        b = param_refs[2 * i + 1][...]
        k, n = w.shape
        if k <= _SMALL_K:
            # K=5 entry layer: an MXU pass would be ~2% utilized; do a
            # broadcast multiply-add on the VPU in f32 instead.
            acc = jnp.broadcast_to(b, (x.shape[0], n))
            for j in range(k):
                acc = acc + x[:, j:j + 1] * w[j:j + 1, :]
            x = acc
        else:
            # Weights are pre-cast (bf16 by default); accumulate in f32.
            y = jnp.dot(x.astype(w.dtype), w,
                        preferred_element_type=jnp.float32)
            x = y + b                           # f32 bias-add on the VPU
        if i < n_layers - 1:
            x = jnp.maximum(x, 0.0)             # ReLU in f32
    out_ref[...] = x.astype(out_ref.dtype)


# ---------------------------------------------------------------------------
# Wrapper
# ---------------------------------------------------------------------------
def _choose_tiling(batch, tile_b):
    """Pick (tile rows, padded batch): minimal padding, even grid when big."""
    tiles = max(1, _cdiv(batch, tile_b))
    # v7x megacore: prefer an even number of grid steps once the batch is
    # large enough that each TensorCore still gets a reasonable tile.
    if tiles % 2 == 1 and batch >= 256:
        tiles += 1
    tb = _round_up(_cdiv(batch, tiles), 8)      # sublane multiple of 8
    return tb, tiles * tb


def mlp_forward(x1, x2, prepared, *, tile_b=1024, out_dtype=jnp.bfloat16):
    weight_args, n_out = prepared
    n_layers = len(weight_args) // 2
    batch = x1.shape[0]

    # Fused tower input: cat(x1, x2) along features -> (B, 5).
    x = jnp.concatenate([x1.astype(jnp.float32), x2.astype(jnp.float32)], axis=1)

    tb, padded_batch = _choose_tiling(batch, tile_b)
    if padded_batch != batch:
        x = jnp.pad(x, ((0, padded_batch - batch), (0, 0)))

    def _resident(i):      # same block every grid step -> weights stay in VMEM
        return (0, 0)

    grid_spec = pltpu.PrefetchScalarGridSpec(
        num_scalar_prefetch=0,
        grid=(padded_batch // tb,),
        in_specs=[pl.BlockSpec((tb, x.shape[1]), lambda i: (i, 0))]
                 + [pl.BlockSpec(p.shape, _resident) for p in weight_args],
        out_specs=pl.BlockSpec((tb, _LANE), lambda i: (i, 0)),
    )

    kernel = functools.partial(mlp_kernel, n_layers=n_layers)

    out = pl.pallas_call(
        kernel,
        out_shape=jax.ShapeDtypeStruct((padded_batch, _LANE), out_dtype),
        grid_spec=grid_spec,
        compiler_params=pltpu.CompilerParams(
            dimension_semantics=("parallel",),      # megacore sharding on v7x
            vmem_limit_bytes=32 * 1024 * 1024,      # fits v5e/v6e/v7x
        ),
    )(x, *weight_args)

    return out[:batch, :n_out]


# Pure-JAX reference (unfused, f32) for sanity checking.
def mlp_forward_ref(x1, x2, dt_params, h0_params, cls_params):
    def tower(x, params):
        n = len(params) // 2
        for i in range(n):
            x = x @ params[2 * i] + params[2 * i + 1]
            if i < n - 1:
                x = jnp.maximum(x, 0.0)
        return x
    y1 = tower(x1, dt_params)
    y2 = tower(x2, h0_params)
    return tower(jnp.concatenate([y1, y2], axis=1), cls_params)


if __name__ == "__main__":
    key = jax.random.PRNGKey(0)

    key, dt_params = _init_tower(key, DT_DIMS)
    key, h0_params = _init_tower(key, H0_DIMS)
    key, cls_params = _init_tower(key, CLS_DIMS)

    # One-time parameter preparation (kept out of the per-call hot path).
    prep_bf16 = prepare_params(dt_params, h0_params, cls_params,
                               compute_dtype=jnp.bfloat16)
    prep_f32 = prepare_params(dt_params, h0_params, cls_params,
                              compute_dtype=jnp.float32)

    # Small case matching the module's natural input shapes.
    batch = 8
    key, k1, k2 = jax.random.split(key, 3)
    x1 = jax.random.normal(k1, (batch, DT_DIMS[0]), jnp.float32)   # (8, 4)
    x2 = jax.random.normal(k2, (batch, H0_DIMS[0]), jnp.float32)   # (8, 1)

    ref = mlp_forward_ref(x1, x2, dt_params, h0_params, cls_params)

    # f32 compute / f32 output: fusion, folding and lane padding are exact.
    out_f32 = jax.block_until_ready(
        mlp_forward(x1, x2, prep_f32, out_dtype=jnp.float32))
    assert out_f32.shape == (batch, 2), out_f32.shape
    assert jnp.allclose(out_f32, ref, atol=1e-2, rtol=1e-2), (out_f32, ref)

    # Default bf16 MXU path with bf16 output: relaxed tolerance.
    out_bf16 = jax.block_until_ready(mlp_forward(x1, x2, prep_bf16))
    assert out_bf16.shape == (batch, 2), out_bf16.shape
    assert jnp.allclose(out_bf16.astype(jnp.float32), ref,
                        atol=1e-1, rtol=1e-1), (out_bf16, ref)

    # Larger batch exercising the grid, even-tile split and minimal padding
    # (520 rows -> 6 tiles of 88 rows, 528 padded; not 1024).
    big = 520
    key, k3, k4 = jax.random.split(key, 3)
    xb1 = jax.random.normal(k3, (big, DT_DIMS[0]), jnp.float32)
    xb2 = jax.random.normal(k4, (big, H0_DIMS[0]), jnp.float32)
    out_big = jax.block_until_ready(
        mlp_forward(xb1, xb2, prep_bf16, tile_b=128))
    ref_big = mlp_forward_ref(xb1, xb2, dt_params, h0_params, cls_params)
    assert out_big.shape == (big, 2), out_big.shape
    assert jnp.allclose(out_big.astype(jnp.float32), ref_big,
                        atol=1e-1, rtol=1e-1), "grid path mismatch"

    # Default tile_b path on the larger batch (single / even grid handling).
    out_big2 = jax.block_until_ready(mlp_forward(xb1, xb2, prep_bf16))
    assert out_big2.shape == (big, 2), out_big2.shape
    assert jnp.allclose(out_big2.astype(jnp.float32), ref_big,
                        atol=1e-1, rtol=1e-1), "default-tile path mismatch"

    print("KERNEL_OK")
</pallas_src>

<mosaic_0001>
module attributes {stable_mosaic.version = 11 : i64} {
  func.func @mlp_kernel(%arg0: i32, %arg1: memref<8x5xf32, #tpu.memory_space<vmem>>, %arg2: memref<5x32xf32, #tpu.memory_space<vmem>>, %arg3: memref<1x32xf32, #tpu.memory_space<vmem>>, %arg4: memref<32x128xf32, #tpu.memory_space<vmem>>, %arg5: memref<1x128xf32, #tpu.memory_space<vmem>>, %arg6: memref<128x512xf32, #tpu.memory_space<vmem>>, %arg7: memref<1x512xf32, #tpu.memory_space<vmem>>, %arg8: memref<512x128xf32, #tpu.memory_space<vmem>>, %arg9: memref<1x128xf32, #tpu.memory_space<vmem>>, %arg10: memref<128x32xf32, #tpu.memory_space<vmem>>, %arg11: memref<1x32xf32, #tpu.memory_space<vmem>>, %arg12: memref<32x16xf32, #tpu.memory_space<vmem>>, %arg13: memref<1x16xf32, #tpu.memory_space<vmem>>, %arg14: memref<16x64xf32, #tpu.memory_space<vmem>>, %arg15: memref<1x64xf32, #tpu.memory_space<vmem>>, %arg16: memref<64x256xf32, #tpu.memory_space<vmem>>, %arg17: memref<1x256xf32, #tpu.memory_space<vmem>>, %arg18: memref<256x64xf32, #tpu.memory_space<vmem>>, %arg19: memref<1x64xf32, #tpu.memory_space<vmem>>, %arg20: memref<64x16xf32, #tpu.memory_space<vmem>>, %arg21: memref<1x16xf32, #tpu.memory_space<vmem>>, %arg22: memref<16x128xf32, #tpu.memory_space<vmem>>, %arg23: memref<1x128xf32, #tpu.memory_space<vmem>>, %arg24: memref<8x128xf32, #tpu.memory_space<vmem>>) attributes {dimension_semantics = [#tpu.dimension_semantics<parallel>], iteration_bounds = array<i64: 1>, scalar_prefetch = 0 : i64, scratch_operands = 0 : i64, tpu.core_type = #tpu.core_type<tc>, window_params = [{transform_indices = @transform_0, window_bounds = array<i64: 8, 5>}, {pipeline_mode = #tpu.pipeline_mode<synchronous>, transform_indices = @transform_1, window_bounds = array<i64: 5, 32>}, {pipeline_mode = #tpu.pipeline_mode<synchronous>, transform_indices = @transform_2, window_bounds = array<i64: 1, 32>}, {pipeline_mode = #tpu.pipeline_mode<synchronous>, transform_indices = @transform_3, window_bounds = array<i64: 32, 128>}, {pipeline_mode = #tpu.pipeline_mode<synchronous>, transform_indices = @transform_4, window_bounds = array<i64: 1, 128>}, {pipeline_mode = #tpu.pipeline_mode<synchronous>, transform_indices = @transform_5, window_bounds = array<i64: 128, 512>}, {pipeline_mode = #tpu.pipeline_mode<synchronous>, transform_indices = @transform_6, window_bounds = array<i64: 1, 512>}, {pipeline_mode = #tpu.pipeline_mode<synchronous>, transform_indices = @transform_7, window_bounds = array<i64: 512, 128>}, {pipeline_mode = #tpu.pipeline_mode<synchronous>, transform_indices = @transform_8, window_bounds = array<i64: 1, 128>}, {pipeline_mode = #tpu.pipeline_mode<synchronous>, transform_indices = @transform_9, window_bounds = array<i64: 128, 32>}, {pipeline_mode = #tpu.pipeline_mode<synchronous>, transform_indices = @transform_10, window_bounds = array<i64: 1, 32>}, {pipeline_mode = #tpu.pipeline_mode<synchronous>, transform_indices = @transform_11, window_bounds = array<i64: 32, 16>}, {pipeline_mode = #tpu.pipeline_mode<synchronous>, transform_indices = @transform_12, window_bounds = array<i64: 1, 16>}, {pipeline_mode = #tpu.pipeline_mode<synchronous>, transform_indices = @transform_13, window_bounds = array<i64: 16, 64>}, {pipeline_mode = #tpu.pipeline_mode<synchronous>, transform_indices = @transform_14, window_bounds = array<i64: 1, 64>}, {pipeline_mode = #tpu.pipeline_mode<synchronous>, transform_indices = @transform_15, window_bounds = array<i64: 64, 256>}, {pipeline_mode = #tpu.pipeline_mode<synchronous>, transform_indices = @transform_16, window_bounds = array<i64: 1, 256>}, {pipeline_mode = #tpu.pipeline_mode<synchronous>, transform_indices = @transform_17, window_bounds = array<i64: 256, 64>}, {pipeline_mode = #tpu.pipeline_mode<synchronous>, transform_indices = @transform_18, window_bounds = array<i64: 1, 64>}, {pipeline_mode = #tpu.pipeline_mode<synchronous>, transform_indices = @transform_19, window_bounds = array<i64: 64, 16>}, {pipeline_mode = #tpu.pipeline_mode<synchronous>, transform_indices = @transform_20, window_bounds = array<i64: 1, 16>}, {pipeline_mode = #tpu.pipeline_mode<synchronous>, transform_indices = @transform_21, window_bounds = array<i64: 16, 128>}, {pipeline_mode = #tpu.pipeline_mode<synchronous>, transform_indices = @transform_22, window_bounds = array<i64: 1, 128>}, {transform_indices = @transform_23, window_bounds = array<i64: 8, 128>}]} {
    %c0 = arith.constant 0 : index
    %c0_0 = arith.constant 0 : index
    %0 = vector.load %arg1[%c0, %c0_0] : memref<8x5xf32, #tpu.memory_space<vmem>>, vector<8x5xf32>
    %c0_1 = arith.constant 0 : index
    %c0_2 = arith.constant 0 : index
    %1 = vector.load %arg2[%c0_1, %c0_2] : memref<5x32xf32, #tpu.memory_space<vmem>>, vector<5x32xf32>
    %c0_3 = arith.constant 0 : index
    %c0_4 = arith.constant 0 : index
    %2 = vector.load %arg3[%c0_3, %c0_4] : memref<1x32xf32, #tpu.memory_space<vmem>>, vector<1x32xf32>
    %3 = vector.shape_cast %2 : vector<1x32xf32> to vector<1x32xf32>
    %4 = vector.broadcast %3 : vector<1x32xf32> to vector<8x32xf32>
    %5 = vector.extract_strided_slice %0 {offsets = [0, 0], sizes = [8, 1], strides = [1, 1]} : vector<8x5xf32> to vector<8x1xf32>
    %6 = vector.extract_strided_slice %1 {offsets = [0, 0], sizes = [1, 32], strides = [1, 1]} : vector<5x32xf32> to vector<1x32xf32>
    %7 = vector.broadcast %5 : vector<8x1xf32> to vector<8x32xf32>
    %8 = vector.broadcast %6 : vector<1x32xf32> to vector<8x32xf32>
    %9 = arith.mulf %7, %8 : vector<8x32xf32>
    %10 = arith.addf %4, %9 : vector<8x32xf32>
    %11 = vector.extract_strided_slice %0 {offsets = [0, 1], sizes = [8, 1], strides = [1, 1]} : vector<8x5xf32> to vector<8x1xf32>
    %12 = vector.extract_strided_slice %1 {offsets = [1, 0], sizes = [1, 32], strides = [1, 1]} : vector<5x32xf32> to vector<1x32xf32>
    %13 = vector.broadcast %11 : vector<8x1xf32> to vector<8x32xf32>
    %14 = vector.broadcast %12 : vector<1x32xf32> to vector<8x32xf32>
    %15 = arith.mulf %13, %14 : vector<8x32xf32>
    %16 = arith.addf %10, %15 : vector<8x32xf32>
    %17 = vector.extract_strided_slice %0 {offsets = [0, 2], sizes = [8, 1], strides = [1, 1]} : vector<8x5xf32> to vector<8x1xf32>
    %18 = vector.extract_strided_slice %1 {offsets = [2, 0], sizes = [1, 32], strides = [1, 1]} : vector<5x32xf32> to vector<1x32xf32>
    %19 = vector.broadcast %17 : vector<8x1xf32> to vector<8x32xf32>
    %20 = vector.broadcast %18 : vector<1x32xf32> to vector<8x32xf32>
    %21 = arith.mulf %19, %20 : vector<8x32xf32>
    %22 = arith.addf %16, %21 : vector<8x32xf32>
    %23 = vector.extract_strided_slice %0 {offsets = [0, 3], sizes = [8, 1], strides = [1, 1]} : vector<8x5xf32> to vector<8x1xf32>
    %24 = vector.extract_strided_slice %1 {offsets = [3, 0], sizes = [1, 32], strides = [1, 1]} : vector<5x32xf32> to vector<1x32xf32>
    %25 = vector.broadcast %23 : vector<8x1xf32> to vector<8x32xf32>
    %26 = vector.broadcast %24 : vector<1x32xf32> to vector<8x32xf32>
    %27 = arith.mulf %25, %26 : vector<8x32xf32>
    %28 = arith.addf %22, %27 : vector<8x32xf32>
    %29 = vector.extract_strided_slice %0 {offsets = [0, 4], sizes = [8, 1], strides = [1, 1]} : vector<8x5xf32> to vector<8x1xf32>
    %30 = vector.extract_strided_slice %1 {offsets = [4, 0], sizes = [1, 32], strides = [1, 1]} : vector<5x32xf32> to vector<1x32xf32>
    %31 = vector.broadcast %29 : vector<8x1xf32> to vector<8x32xf32>
    %32 = vector.broadcast %30 : vector<1x32xf32> to vector<8x32xf32>
    %33 = arith.mulf %31, %32 : vector<8x32xf32>
    %34 = arith.addf %28, %33 : vector<8x32xf32>
    %cst = arith.constant 0.000000e+00 : f32
    %35 = vector.broadcast %cst : f32 to vector<8x32xf32>
    %36 = arith.maximumf %34, %35 : vector<8x32xf32>
    %c0_5 = arith.constant 0 : index
    %c0_6 = arith.constant 0 : index
    %37 = vector.load %arg4[%c0_5, %c0_6] : memref<32x128xf32, #tpu.memory_space<vmem>>, vector<32x128xf32>
    %c0_7 = arith.constant 0 : index
    %c0_8 = arith.constant 0 : index
    %38 = vector.load %arg5[%c0_7, %c0_8] : memref<1x128xf32, #tpu.memory_space<vmem>>, vector<1x128xf32>
    %cst_9 = arith.constant dense<0.000000e+00> : vector<8x128xf32>
    %39 = tpu.matmul %36, %37, %cst_9 {dimension_numbers = #tpu.dot_dimension_numbers<[1], [0], [0], [1], [0, 0, 1, 1], [], []>} : vector<8x32xf32>, vector<32x128xf32>, vector<8x128xf32> -> vector<8x128xf32>
    %40 = vector.broadcast %38 : vector<1x128xf32> to vector<8x128xf32>
    %41 = arith.addf %39, %40 : vector<8x128xf32>
    %cst_10 = arith.constant 0.000000e+00 : f32
    %42 = vector.broadcast %cst_10 : f32 to vector<8x128xf32>
    %43 = arith.maximumf %41, %42 : vector<8x128xf32>
    %c0_11 = arith.constant 0 : index
    %c0_12 = arith.constant 0 : index
    %44 = vector.load %arg6[%c0_11, %c0_12] : memref<128x512xf32, #tpu.memory_space<vmem>>, vector<128x512xf32>
    %c0_13 = arith.constant 0 : index
    %c0_14 = arith.constant 0 : index
    %45 = vector.load %arg7[%c0_13, %c0_14] : memref<1x512xf32, #tpu.memory_space<vmem>>, vector<1x512xf32>
    %cst_15 = arith.constant dense<0.000000e+00> : vector<8x512xf32>
    %46 = tpu.matmul %43, %44, %cst_15 {dimension_numbers = #tpu.dot_dimension_numbers<[1], [0], [0], [1], [0, 0, 1, 1], [], []>} : vector<8x128xf32>, vector<128x512xf32>, vector<8x512xf32> -> vector<8x512xf32>
    %47 = vector.broadcast %45 : vector<1x512xf32> to vector<8x512xf32>
    %48 = arith.addf %46, %47 : vector<8x512xf32>
    %cst_16 = arith.constant 0.000000e+00 : f32
    %49 = vector.broadcast %cst_16 : f32 to vector<8x512xf32>
    %50 = arith.maximumf %48, %49 : vector<8x512xf32>
    %c0_17 = arith.constant 0 : index
    %c0_18 = arith.constant 0 : index
    %51 = vector.load %arg8[%c0_17, %c0_18] : memref<512x128xf32, #tpu.memory_space<vmem>>, vector<512x128xf32>
    %c0_19 = arith.constant 0 : index
    %c0_20 = arith.constant 0 : index
    %52 = vector.load %arg9[%c0_19, %c0_20] : memref<1x128xf32, #tpu.memory_space<vmem>>, vector<1x128xf32>
    %cst_21 = arith.constant dense<0.000000e+00> : vector<8x128xf32>
    %53 = tpu.matmul %50, %51, %cst_21 {dimension_numbers = #tpu.dot_dimension_numbers<[1], [0], [0], [1], [0, 0, 1, 1], [], []>} : vector<8x512xf32>, vector<512x128xf32>, vector<8x128xf32> -> vector<8x128xf32>
    %54 = vector.broadcast %52 : vector<1x128xf32> to vector<8x128xf32>
    %55 = arith.addf %53, %54 : vector<8x128xf32>
    %cst_22 = arith.constant 0.000000e+00 : f32
    %56 = vector.broadcast %cst_22 : f32 to vector<8x128xf32>
    %57 = arith.maximumf %55, %56 : vector<8x128xf32>
    %c0_23 = arith.constant 0 : index
    %c0_24 = arith.constant 0 : index
    %58 = vector.load %arg10[%c0_23, %c0_24] : memref<128x32xf32, #tpu.memory_space<vmem>>, vector<128x32xf32>
    %c0_25 = arith.constant 0 : index
    %c0_26 = arith.constant 0 : index
    %59 = vector.load %arg11[%c0_25, %c0_26] : memref<1x32xf32, #tpu.memory_space<vmem>>, vector<1x32xf32>
    %cst_27 = arith.constant dense<0.000000e+00> : vector<8x32xf32>
    %60 = tpu.matmul %57, %58, %cst_27 {dimension_numbers = #tpu.dot_dimension_numbers<[1], [0], [0], [1], [0, 0, 1, 1], [], []>} : vector<8x128xf32>, vector<128x32xf32>, vector<8x32xf32> -> vector<8x32xf32>
    %61 = vector.broadcast %59 : vector<1x32xf32> to vector<8x32xf32>
    %62 = arith.addf %60, %61 : vector<8x32xf32>
    %cst_28 = arith.constant 0.000000e+00 : f32
    %63 = vector.broadcast %cst_28 : f32 to vector<8x32xf32>
    %64 = arith.maximumf %62, %63 : vector<8x32xf32>
    %c0_29 = arith.constant 0 : index
    %c0_30 = arith.constant 0 : index
    %65 = vector.load %arg12[%c0_29, %c0_30] : memref<32x16xf32, #tpu.memory_space<vmem>>, vector<32x16xf32>
    %c0_31 = arith.constant 0 : index
    %c0_32 = arith.constant 0 : index
    %66 = vector.load %arg13[%c0_31, %c0_32] : memref<1x16xf32, #tpu.memory_space<vmem>>, vector<1x16xf32>
    %cst_33 = arith.constant dense<0.000000e+00> : vector<8x16xf32>
    %67 = tpu.matmul %64, %65, %cst_33 {dimension_numbers = #tpu.dot_dimension_numbers<[1], [0], [0], [1], [0, 0, 1, 1], [], []>} : vector<8x32xf32>, vector<32x16xf32>, vector<8x16xf32> -> vector<8x16xf32>
    %68 = vector.broadcast %66 : vector<1x16xf32> to vector<8x16xf32>
    %69 = arith.addf %67, %68 : vector<8x16xf32>
    %cst_34 = arith.constant 0.000000e+00 : f32
    %70 = vector.broadcast %cst_34 : f32 to vector<8x16xf32>
    %71 = arith.maximumf %69, %70 : vector<8x16xf32>
    %c0_35 = arith.constant 0 : index
    %c0_36 = arith.constant 0 : index
    %72 = vector.load %arg14[%c0_35, %c0_36] : memref<16x64xf32, #tpu.memory_space<vmem>>, vector<16x64xf32>
    %c0_37 = arith.constant 0 : index
    %c0_38 = arith.constant 0 : index
    %73 = vector.load %arg15[%c0_37, %c0_38] : memref<1x64xf32, #tpu.memory_space<vmem>>, vector<1x64xf32>
    %cst_39 = arith.constant dense<0.000000e+00> : vector<8x64xf32>
    %74 = tpu.matmul %71, %72, %cst_39 {dimension_numbers = #tpu.dot_dimension_numbers<[1], [0], [0], [1], [0, 0, 1, 1], [], []>} : vector<8x16xf32>, vector<16x64xf32>, vector<8x64xf32> -> vector<8x64xf32>
    %75 = vector.broadcast %73 : vector<1x64xf32> to vector<8x64xf32>
    %76 = arith.addf %74, %75 : vector<8x64xf32>
    %cst_40 = arith.constant 0.000000e+00 : f32
    %77 = vector.broadcast %cst_40 : f32 to vector<8x64xf32>
    %78 = arith.maximumf %76, %77 : vector<8x64xf32>
    %c0_41 = arith.constant 0 : index
    %c0_42 = arith.constant 0 : index
    %79 = vector.load %arg16[%c0_41, %c0_42] : memref<64x256xf32, #tpu.memory_space<vmem>>, vector<64x256xf32>
    %c0_43 = arith.constant 0 : index
    %c0_44 = arith.constant 0 : index
    %80 = vector.load %arg17[%c0_43, %c0_44] : memref<1x256xf32, #tpu.memory_space<vmem>>, vector<1x256xf32>
    %cst_45 = arith.constant dense<0.000000e+00> : vector<8x256xf32>
    %81 = tpu.matmul %78, %79, %cst_45 {dimension_numbers = #tpu.dot_dimension_numbers<[1], [0], [0], [1], [0, 0, 1, 1], [], []>} : vector<8x64xf32>, vector<64x256xf32>, vector<8x256xf32> -> vector<8x256xf32>
    %82 = vector.broadcast %80 : vector<1x256xf32> to vector<8x256xf32>
    %83 = arith.addf %81, %82 : vector<8x256xf32>
    %cst_46 = arith.constant 0.000000e+00 : f32
    %84 = vector.broadcast %cst_46 : f32 to vector<8x256xf32>
    %85 = arith.maximumf %83, %84 : vector<8x256xf32>
    %c0_47 = arith.constant 0 : index
    %c0_48 = arith.constant 0 : index
    %86 = vector.load %arg18[%c0_47, %c0_48] : memref<256x64xf32, #tpu.memory_space<vmem>>, vector<256x64xf32>
    %c0_49 = arith.constant 0 : index
    %c0_50 = arith.constant 0 : index
    %87 = vector.load %arg19[%c0_49, %c0_50] : memref<1x64xf32, #tpu.memory_space<vmem>>, vector<1x64xf32>
    %cst_51 = arith.constant dense<0.000000e+00> : vector<8x64xf32>
    %88 = tpu.matmul %85, %86, %cst_51 {dimension_numbers = #tpu.dot_dimension_numbers<[1], [0], [0], [1], [0, 0, 1, 1], [], []>} : vector<8x256xf32>, vector<256x64xf32>, vector<8x64xf32> -> vector<8x64xf32>
    %89 = vector.broadcast %87 : vector<1x64xf32> to vector<8x64xf32>
    %90 = arith.addf %88, %89 : vector<8x64xf32>
    %cst_52 = arith.constant 0.000000e+00 : f32
    %91 = vector.broadcast %cst_52 : f32 to vector<8x64xf32>
    %92 = arith.maximumf %90, %91 : vector<8x64xf32>
    %c0_53 = arith.constant 0 : index
    %c0_54 = arith.constant 0 : index
    %93 = vector.load %arg20[%c0_53, %c0_54] : memref<64x16xf32, #tpu.memory_space<vmem>>, vector<64x16xf32>
    %c0_55 = arith.constant 0 : index
    %c0_56 = arith.constant 0 : index
    %94 = vector.load %arg21[%c0_55, %c0_56] : memref<1x16xf32, #tpu.memory_space<vmem>>, vector<1x16xf32>
    %cst_57 = arith.constant dense<0.000000e+00> : vector<8x16xf32>
    %95 = tpu.matmul %92, %93, %cst_57 {dimension_numbers = #tpu.dot_dimension_numbers<[1], [0], [0], [1], [0, 0, 1, 1], [], []>} : vector<8x64xf32>, vector<64x16xf32>, vector<8x16xf32> -> vector<8x16xf32>
    %96 = vector.broadcast %94 : vector<1x16xf32> to vector<8x16xf32>
    %97 = arith.addf %95, %96 : vector<8x16xf32>
    %cst_58 = arith.constant 0.000000e+00 : f32
    %98 = vector.broadcast %cst_58 : f32 to vector<8x16xf32>
    %99 = arith.maximumf %97, %98 : vector<8x16xf32>
    %c0_59 = arith.constant 0 : index
    %c0_60 = arith.constant 0 : index
    %100 = vector.load %arg22[%c0_59, %c0_60] : memref<16x128xf32, #tpu.memory_space<vmem>>, vector<16x128xf32>
    %c0_61 = arith.constant 0 : index
    %c0_62 = arith.constant 0 : index
    %101 = vector.load %arg23[%c0_61, %c0_62] : memref<1x128xf32, #tpu.memory_space<vmem>>, vector<1x128xf32>
    %cst_63 = arith.constant dense<0.000000e+00> : vector<8x128xf32>
    %102 = tpu.matmul %99, %100, %cst_63 {dimension_numbers = #tpu.dot_dimension_numbers<[1], [0], [0], [1], [0, 0, 1, 1], [], []>} : vector<8x16xf32>, vector<16x128xf32>, vector<8x128xf32> -> vector<8x128xf32>
    %103 = vector.broadcast %101 : vector<1x128xf32> to vector<8x128xf32>
    %104 = arith.addf %102, %103 : vector<8x128xf32>
    %c0_64 = arith.constant 0 : index
    %c0_65 = arith.constant 0 : index
    %105 = vector.load %arg24[%c0_64, %c0_65] : memref<8x128xf32, #tpu.memory_space<vmem>>, vector<8x128xf32>
    tpu.vector_store %arg24[%c0_64, %c0_65], %104 {strides = array<i32>} : memref<8x128xf32, #tpu.memory_space<vmem>>, vector<8x128xf32>,
    return
  }
  func.func @transform_0(%arg0: i32) -> (i32, i32) {
    %c0_i32 = arith.constant 0 : i32
    %c0_i32_0 = arith.constant 0 : i32
    return %arg0, %c0_i32 : i32, i32
  }
  func.func @transform_1(%arg0: i32) -> (i32, i32) {
    %c0_i32 = arith.constant 0 : i32
    %c0_i32_0 = arith.constant 0 : i32
    %c0_i32_1 = arith.constant 0 : i32
    return %c0_i32, %c0_i32_0 : i32, i32
  }
  func.func @transform_2(%arg0: i32) -> (i32, i32) {
    %c0_i32 = arith.constant 0 : i32
    %c0_i32_0 = arith.constant 0 : i32
    %c0_i32_1 = arith.constant 0 : i32
    return %c0_i32, %c0_i32_0 : i32, i32
  }
  func.func @transform_3(%arg0: i32) -> (i32, i32) {
    %c0_i32 = arith.constant 0 : i32
    %c0_i32_0 = arith.constant 0 : i32
    %c0_i32_1 = arith.constant 0 : i32
    return %c0_i32, %c0_i32_0 : i32, i32
  }
  func.func @transform_4(%arg0: i32) -> (i32, i32) {
    %c0_i32 = arith.constant 0 : i32
    %c0_i32_0 = arith.constant 0 : i32
    %c0_i32_1 = arith.constant 0 : i32
    return %c0_i32, %c0_i32_0 : i32, i32
  }
  func.func @transform_5(%arg0: i32) -> (i32, i32) {
    %c0_i32 = arith.constant 0 : i32
    %c0_i32_0 = arith.constant 0 : i32
    %c0_i32_1 = arith.constant 0 : i32
    return %c0_i32, %c0_i32_0 : i32, i32
  }
  func.func @transform_6(%arg0: i32) -> (i32, i32) {
    %c0_i32 = arith.constant 0 : i32
    %c0_i32_0 = arith.constant 0 : i32
    %c0_i32_1 = arith.constant 0 : i32
    return %c0_i32, %c0_i32_0 : i32, i32
  }
  func.func @transform_7(%arg0: i32) -> (i32, i32) {
    %c0_i32 = arith.constant 0 : i32
    %c0_i32_0 = arith.constant 0 : i32
    %c0_i32_1 = arith.constant 0 : i32
    return %c0_i32, %c0_i32_0 : i32, i32
  }
  func.func @transform_8(%arg0: i32) -> (i32, i32) {
    %c0_i32 = arith.constant 0 : i32
    %c0_i32_0 = arith.constant 0 : i32
    %c0_i32_1 = arith.constant 0 : i32
    return %c0_i32, %c0_i32_0 : i32, i32
  }
  func.func @transform_9(%arg0: i32) -> (i32, i32) {
    %c0_i32 = arith.constant 0 : i32
    %c0_i32_0 = arith.constant 0 : i32
    %c0_i32_1 = arith.constant 0 : i32
    return %c0_i32, %c0_i32_0 : i32, i32
  }
  func.func @transform_10(%arg0: i32) -> (i32, i32) {
    %c0_i32 = arith.constant 0 : i32
    %c0_i32_0 = arith.constant 0 : i32
    %c0_i32_1 = arith.constant 0 : i32
    return %c0_i32, %c0_i32_0 : i32, i32
  }
  func.func @transform_11(%arg0: i32) -> (i32, i32) {
    %c0_i32 = arith.constant 0 : i32
    %c0_i32_0 = arith.constant 0 : i32
    %c0_i32_1 = arith.constant 0 : i32
    return %c0_i32, %c0_i32_0 : i32, i32
  }
  func.func @transform_12(%arg0: i32) -> (i32, i32) {
    %c0_i32 = arith.constant 0 : i32
    %c0_i32_0 = arith.constant 0 : i32
    %c0_i32_1 = arith.constant 0 : i32
    return %c0_i32, %c0_i32_0 : i32, i32
  }
  func.func @transform_13(%arg0: i32) -> (i32, i32) {
    %c0_i32 = arith.constant 0 : i32
    %c0_i32_0 = arith.constant 0 : i32
    %c0_i32_1 = arith.constant 0 : i32
    return %c0_i32, %c0_i32_0 : i32, i32
  }
  func.func @transform_14(%arg0: i32) -> (i32, i32) {
    %c0_i32 = arith.constant 0 : i32
    %c0_i32_0 = arith.constant 0 : i32
    %c0_i32_1 = arith.constant 0 : i32
    return %c0_i32, %c0_i32_0 : i32, i32
  }
  func.func @transform_15(%arg0: i32) -> (i32, i32) {
    %c0_i32 = arith.constant 0 : i32
    %c0_i32_0 = arith.constant 0 : i32
    %c0_i32_1 = arith.constant 0 : i32
    return %c0_i32, %c0_i32_0 : i32, i32
  }
  func.func @transform_16(%arg0: i32) -> (i32, i32) {
    %c0_i32 = arith.constant 0 : i32
    %c0_i32_0 = arith.constant 0 : i32
    %c0_i32_1 = arith.constant 0 : i32
    return %c0_i32, %c0_i32_0 : i32, i32
  }
  func.func @transform_17(%arg0: i32) -> (i32, i32) {
    %c0_i32 = arith.constant 0 : i32
    %c0_i32_0 = arith.constant 0 : i32
    %c0_i32_1 = arith.constant 0 : i32
    return %c0_i32, %c0_i32_0 : i32, i32
  }
  func.func @transform_18(%arg0: i32) -> (i32, i32) {
    %c0_i32 = arith.constant 0 : i32
    %c0_i32_0 = arith.constant 0 : i32
    %c0_i32_1 = arith.constant 0 : i32
    return %c0_i32, %c0_i32_0 : i32, i32
  }
  func.func @transform_19(%arg0: i32) -> (i32, i32) {
    %c0_i32 = arith.constant 0 : i32
    %c0_i32_0 = arith.constant 0 : i32
    %c0_i32_1 = arith.constant 0 : i32
    return %c0_i32, %c0_i32_0 : i32, i32
  }
  func.func @transform_20(%arg0: i32) -> (i32, i32) {
    %c0_i32 = arith.constant 0 : i32
    %c0_i32_0 = arith.constant 0 : i32
    %c0_i32_1 = arith.constant 0 : i32
    return %c0_i32, %c0_i32_0 : i32, i32
  }
  func.func @transform_21(%arg0: i32) -> (i32, i32) {
    %c0_i32 = arith.constant 0 : i32
    %c0_i32_0 = arith.constant 0 : i32
    %c0_i32_1 = arith.constant 0 : i32
    return %c0_i32, %c0_i32_0 : i32, i32
  }
  func.func @transform_22(%arg0: i32) -> (i32, i32) {
    %c0_i32 = arith.constant 0 : i32
    %c0_i32_0 = arith.constant 0 : i32
    %c0_i32_1 = arith.constant 0 : i32
    return %c0_i32, %c0_i32_0 : i32, i32
  }
  func.func @transform_23(%arg0: i32) -> (i32, i32) {
    %c0_i32 = arith.constant 0 : i32
    %c0_i32_0 = arith.constant 0 : i32
    return %arg0, %c0_i32 : i32, i32
  }
}

</mosaic_0001>

<llo_original>
// kernel: tpu_custom_call.1
$region0: #{tpu_custom_call.1}
  #allocation0 [shape = 'u32[]', space=smem, size = 0x4, offset = 0x4, fixed_abs, tag = 'smem constant byte address 0x4 - core index']
  #allocation1 [shape = 'u32[144,128]{1,0:T(1,128)}', space=vmem, size = 0x12000, scoped, tag = 'internal scratch']
  %s0 = inlined_call_operand.hbm [shape: f32[8,5], index: 0, kind: input, shape index: {}]
  %s1 = inlined_call_operand.hbm [shape: f32[5,32], index: 1, kind: input, shape index: {}]
  %s2 = inlined_call_operand.vmem [shape: f32[1,32], index: 2, kind: input, shape index: {}]
  %s3 = inlined_call_operand.hbm [shape: f32[32,128], index: 3, kind: input, shape index: {}]
  %s4 = inlined_call_operand.hbm [shape: f32[1,128], index: 4, kind: input, shape index: {}]
  %s5 = inlined_call_operand.vmem [shape: f32[128,512], index: 5, kind: input, shape index: {}]
  %s6 = inlined_call_operand.hbm [shape: f32[1,512], index: 6, kind: input, shape index: {}]
  %s7 = inlined_call_operand.hbm [shape: f32[512,128], index: 7, kind: input, shape index: {}]
  %s8 = inlined_call_operand.hbm [shape: f32[1,128], index: 8, kind: input, shape index: {}]
  %s9 = inlined_call_operand.vmem [shape: f32[128,32], index: 9, kind: input, shape index: {}]
  %s10 = inlined_call_operand.hbm [shape: f32[1,32], index: 10, kind: input, shape index: {}]
  %s11 = inlined_call_operand.vmem [shape: f32[32,16], index: 11, kind: input, shape index: {}]
  %s12 = inlined_call_operand.hbm [shape: f32[1,16], index: 12, kind: input, shape index: {}]
  %s13 = inlined_call_operand.vmem [shape: f32[16,64], index: 13, kind: input, shape index: {}]
  %s14 = inlined_call_operand.vmem [shape: f32[1,64], index: 14, kind: input, shape index: {}]
  %s15 = inlined_call_operand.hbm [shape: f32[64,256], index: 15, kind: input, shape index: {}]
  %s16 = inlined_call_operand.vmem [shape: f32[1,256], index: 16, kind: input, shape index: {}]
  %s17 = inlined_call_operand.vmem [shape: f32[256,64], index: 17, kind: input, shape index: {}]
  %s18 = inlined_call_operand.vmem [shape: f32[1,64], index: 18, kind: input, shape index: {}]
  %s19 = inlined_call_operand.vmem [shape: f32[64,16], index: 19, kind: input, shape index: {}]
  %s20 = inlined_call_operand.vmem [shape: f32[1,16], index: 20, kind: input, shape index: {}]
  %s21 = inlined_call_operand.vmem [shape: f32[16,128], index: 21, kind: input, shape index: {}]
  %s22 = inlined_call_operand.vmem [shape: f32[1,128], index: 22, kind: input, shape index: {}]
  %s23 = inlined_call_operand.hbm [shape: f32[8,128], index: 23, kind: output, shape index: {}]
  %s24 = sld [smem:[#allocation0]]
  $region142: #{tpu_custom_call.1} parent=0
    _
  %s26 = ssub.s32 1, %s24
  %s27 = scalar_select 0, %s26, %s24
  $region1: #{tpu_custom_call.1} parent=0
    #allocation2 [shape = 'u8[4096]{0}', space=vmem, size = 0x1000, scoped, tag = 'input window, operand 0, single buffered']
    #allocation3 [shape = 's32[1]{0}', space=sflag, size = 0x4, scoped, tag = 'scoped memory for tpu_custom_call.1']
    #allocation4 [shape = 's32[1]{0}', space=sflag, size = 0x4, scoped, tag = 'scoped memory for tpu_custom_call.1']
    #allocation5 [shape = 'u8[4096]{0}', space=vmem, size = 0x1000, scoped, tag = 'input window, operand 1, single buffered']
    #allocation6 [shape = 's32[1]{0}', space=sflag, size = 0x4, scoped, tag = 'scoped memory for tpu_custom_call.1']
    #allocation7 [shape = 'u8[16384]{0}', space=vmem, size = 0x4000, scoped, tag = 'input window, operand 3, single buffered']
    #allocation8 [shape = 'u8[512]{0}', space=vmem, size = 0x400, scoped, tag = 'input window, operand 4, single buffered']
    #allocation9 [shape = 's32[1]{0}', space=sflag, size = 0x4, scoped, tag = 'scoped memory for tpu_custom_call.1']
    #allocation10 [shape = 'u8[2048]{0}', space=vmem, size = 0x800, scoped, tag = 'input window, operand 6, single buffered']
    #allocation11 [shape = 'u8[262144]{0}', space=vmem, size = 0x40000, scoped, tag = 'input window, operand 7, single buffered']
    #allocation12 [shape = 's32[1]{0}', space=sflag, size = 0x4, scoped, tag = 'scoped memory for tpu_custom_call.1']
    #allocation13 [shape = 'u8[512]{0}', space=vmem, size = 0x400, scoped, tag = 'input window, operand 8, single buffered']
    #allocation14 [shape = 'u8[512]{0}', space=vmem, size = 0x400, scoped, tag = 'input window, operand 10, single buffered']
    #allocation15 [shape = 's32[1]{0}', space=sflag, size = 0x4, scoped, tag = 'scoped memory for tpu_custom_call.1']
    #allocation16 [shape = 'u8[512]{0}', space=vmem, size = 0x400, scoped, tag = 'input window, operand 12, single buffered']
    #allocation17 [shape = 'u8[65536]{0}', space=vmem, size = 0x10000, scoped, tag = 'input window, operand 15, single buffered']
    #allocation18 [shape = 's32[1]{0}', space=sflag, size = 0x4, scoped, tag = 'scoped memory for tpu_custom_call.1']
    #allocation19 [shape = 'u8[4096]{0}', space=vmem, size = 0x1000, scoped, tag = 'output window, operand 0, single buffered']
    %28 = vsyncpa [#allocation3], 0
    %29 = vsyncpa [#allocation6], 0
    %30 = vsyncpa [#allocation9], 0
    %31 = vsyncpa [#allocation12], 0
    %32 = vsyncpa [#allocation15], 0
    %33 = vsyncpa [#allocation18], 0
    %34 = vsyncpa [#allocation4], 0
    // Predicated region
    $region2: #{tpu_custom_call.1} parent=1 // pred_check
      _
    $region3: #{tpu_custom_call.1} parent=1 // pred_check_branch
      %36 = sbr.rel (0) target = $region5
    $region4: #{tpu_custom_call.1} parent=1 // pred_region
      %s38 = ssub.s32 128, 128
      %39 = vsyncadd [#allocation3], %s38
      %s41 = sshll.u32 [#allocation2], 4
      %s42 = int_to_ptr.vmem [resolvable:$true] %s41
      %44 = dma.hbm_to_vmem [thread:$0]  %s0, 128, %s42, [#allocation3]
    $region5: #{tpu_custom_call.1} parent=1 // pred_fallthru
      _
    // Predicated region
    $region6: #{tpu_custom_call.1} parent=1 // pred_check
      _
    $region7: #{tpu_custom_call.1} parent=1 // pred_check_branch
      %46 = sbr.rel (0) target = $region9
    $region8: #{tpu_custom_call.1} parent=1 // pred_region
      %s48 = ssub.s32 128, 128
      %49 = vsyncadd [#allocation6], %s48
      %s51 = sshll.u32 [#allocation5], 4
      %s52 = int_to_ptr.vmem [resolvable:$true] %s51
      %54 = dma.hbm_to_vmem [thread:$0]  %s1, 128, %s52, [#allocation6]
    $region9: #{tpu_custom_call.1} parent=1 // pred_fallthru
      _
    // Predicated region
    $region10: #{tpu_custom_call.1} parent=1 // pred_check
      _
    $region11: #{tpu_custom_call.1} parent=1 // pred_check_branch
      %56 = sbr.rel (0) target = $region13
    $region12: #{tpu_custom_call.1} parent=1 // pred_region
      _
    $region13: #{tpu_custom_call.1} parent=1 // pred_fallthru
      _
    // Predicated region
    $region14: #{tpu_custom_call.1} parent=1 // pred_check
      _
    $region15: #{tpu_custom_call.1} parent=1 // pred_check_branch
      %58 = sbr.rel (0) target = $region17
    $region16: #{tpu_custom_call.1} parent=1 // pred_region
      %s60 = ssub.s32 512, 512
      %61 = vsyncadd [#allocation6], %s60
      %s62 = sshll.u32 [#allocation7], 4
      %s63 = int_to_ptr.vmem [resolvable:$true] %s62
      %68 = dma.hbm_to_vmem [thread:$0]  %s3, 512, %s63, [#allocation6], 128, 128, 8
    $region17: #{tpu_custom_call.1} parent=1 // pred_fallthru
      _
    // Predicated region
    $region18: #{tpu_custom_call.1} parent=1 // pred_check
      _
    $region19: #{tpu_custom_call.1} parent=1 // pred_check_branch
      %70 = sbr.rel (0) target = $region21
    $region20: #{tpu_custom_call.1} parent=1 // pred_region
      %s72 = ssub.s32 16, 16
      %73 = vsyncadd [#allocation9], %s72
      %s75 = sshll.u32 [#allocation8], 4
      %s76 = int_to_ptr.vmem [resolvable:$true] %s75
      %78 = dma.hbm_to_vmem [thread:$0]  %s4, 16, %s76, [#allocation9]
    $region21: #{tpu_custom_call.1} parent=1 // pred_fallthru
      _
    // Predicated region
    $region22: #{tpu_custom_call.1} parent=1 // pred_check
      _
    $region23: #{tpu_custom_call.1} parent=1 // pred_check_branch
      %80 = sbr.rel (0) target = $region25
    $region24: #{tpu_custom_call.1} parent=1 // pred_region
      _
    $region25: #{tpu_custom_call.1} parent=1 // pred_fallthru
      _
    // Predicated region
    $region26: #{tpu_custom_call.1} parent=1 // pred_check
      _
    $region27: #{tpu_custom_call.1} parent=1 // pred_check_branch
      %82 = sbr.rel (0) target = $region29
    $region28: #{tpu_custom_call.1} parent=1 // pred_region
      %s84 = ssub.s32 64, 64
      %85 = vsyncadd [#allocation9], %s84
      %s87 = sshll.u32 [#allocation10], 4
      %s88 = int_to_ptr.vmem [resolvable:$true] %s87
      %90 = dma.hbm_to_vmem [thread:$0]  %s6, 64, %s88, [#allocation9]
    $region29: #{tpu_custom_call.1} parent=1 // pred_fallthru
      _
    // Predicated region
    $region30: #{tpu_custom_call.1} parent=1 // pred_check
      _
    $region31: #{tpu_custom_call.1} parent=1 // pred_check_branch
      %92 = sbr.rel (0) target = $region33
    $region32: #{tpu_custom_call.1} parent=1 // pred_region
      %s94 = ssub.s32 8192, 8192
      %95 = vsyncadd [#allocation12], %s94
      %s96 = sshll.u32 [#allocation11], 4
      %s97 = int_to_ptr.vmem [resolvable:$true] %s96
      %102 = dma.hbm_to_vmem [thread:$0]  %s7, 8192, %s97, [#allocation12], 128, 128, 8
    $region33: #{tpu_custom_call.1} parent=1 // pred_fallthru
      _
    // Predicated region
    $region34: #{tpu_custom_call.1} parent=1 // pred_check
      _
    $region35: #{tpu_custom_call.1} parent=1 // pred_check_branch
      %104 = sbr.rel (0) target = $region37
    $region36: #{tpu_custom_call.1} parent=1 // pred_region
      %s106 = ssub.s32 16, 16
      %107 = vsyncadd [#allocation12], %s106
      %s109 = sshll.u32 [#allocation13], 4
      %s110 = int_to_ptr.vmem [resolvable:$true] %s109
      %112 = dma.hbm_to_vmem [thread:$0]  %s8, 16, %s110, [#allocation12]
    $region37: #{tpu_custom_call.1} parent=1 // pred_fallthru
      _
    // Predicated region
    $region38: #{tpu_custom_call.1} parent=1 // pred_check
      _
    $region39: #{tpu_custom_call.1} parent=1 // pred_check_branch
      %114 = sbr.rel (0) target = $region41
    $region40: #{tpu_custom_call.1} parent=1 // pred_region
      _
    $region41: #{tpu_custom_call.1} parent=1 // pred_fallthru
      _
    // Predicated region
    $region42: #{tpu_custom_call.1} parent=1 // pred_check
      _
    $region43: #{tpu_custom_call.1} parent=1 // pred_check_branch
      %116 = sbr.rel (0) target = $region45
    $region44: #{tpu_custom_call.1} parent=1 // pred_region
      %s118 = ssub.s32 16, 16
      %119 = vsyncadd [#allocation15], %s118
      %s121 = sshll.u32 [#allocation14], 4
      %s122 = int_to_ptr.vmem [resolvable:$true] %s121
      %124 = dma.hbm_to_vmem [thread:$0]  %s10, 16, %s122, [#allocation15]
    $region45: #{tpu_custom_call.1} parent=1 // pred_fallthru
      _
    // Predicated region
    $region46: #{tpu_custom_call.1} parent=1 // pred_check
      _
    $region47: #{tpu_custom_call.1} parent=1 // pred_check_branch
      %126 = sbr.rel (0) target = $region49
    $region48: #{tpu_custom_call.1} parent=1 // pred_region
      _
    $region49: #{tpu_custom_call.1} parent=1 // pred_fallthru
      _
    // Predicated region
    $region50: #{tpu_custom_call.1} parent=1 // pred_check
      _
    $region51: #{tpu_custom_call.1} parent=1 // pred_check_branch
      %128 = sbr.rel (0) target = $region53
    $region52: #{tpu_custom_call.1} parent=1 // pred_region
      %s130 = ssub.s32 16, 16
      %131 = vsyncadd [#allocation15], %s130
      %s133 = sshll.u32 [#allocation16], 4
      %s134 = int_to_ptr.vmem [resolvable:$true] %s133
      %136 = dma.hbm_to_vmem [thread:$0]  %s12, 16, %s134, [#allocation15]
    $region53: #{tpu_custom_call.1} parent=1 // pred_fallthru
      _
    // Predicated region
    $region54: #{tpu_custom_call.1} parent=1 // pred_check
      _
    $region55: #{tpu_custom_call.1} parent=1 // pred_check_branch
      %138 = sbr.rel (0) target = $region57
    $region56: #{tpu_custom_call.1} parent=1 // pred_region
      _
    $region57: #{tpu_custom_call.1} parent=1 // pred_fallthru
      _
    // Predicated region
    $region58: #{tpu_custom_call.1} parent=1 // pred_check
      _
    $region59: #{tpu_custom_call.1} parent=1 // pred_check_branch
      %140 = sbr.rel (0) target = $region61
    $region60: #{tpu_custom_call.1} parent=1 // pred_region
      _
    $region61: #{tpu_custom_call.1} parent=1 // pred_fallthru
      _
    // Predicated region
    $region62: #{tpu_custom_call.1} parent=1 // pred_check
      _
    $region63: #{tpu_custom_call.1} parent=1 // pred_check_branch
      %142 = sbr.rel (0) target = $region65
    $region64: #{tpu_custom_call.1} parent=1 // pred_region
      %s144 = ssub.s32 2048, 2048
      %145 = vsyncadd [#allocation18], %s144
      %s146 = sshll.u32 [#allocation17], 4
      %s147 = int_to_ptr.vmem [resolvable:$true] %s146
      %152 = dma.hbm_to_vmem [thread:$0]  %s15, 2048, %s147, [#allocation18], 256, 256, 16
    $region65: #{tpu_custom_call.1} parent=1 // pred_fallthru
      _
    // Predicated region
    $region66: #{tpu_custom_call.1} parent=1 // pred_check
      _
    $region67: #{tpu_custom_call.1} parent=1 // pred_check_branch
      %154 = sbr.rel (0) target = $region69
    $region68: #{tpu_custom_call.1} parent=1 // pred_region
      _
    $region69: #{tpu_custom_call.1} parent=1 // pred_fallthru
      _
    // Predicated region
    $region70: #{tpu_custom_call.1} parent=1 // pred_check
      _
    $region71: #{tpu_custom_call.1} parent=1 // pred_check_branch
      %156 = sbr.rel (0) target = $region73
    $region72: #{tpu_custom_call.1} parent=1 // pred_region
      _
    $region73: #{tpu_custom_call.1} parent=1 // pred_fallthru
      _
    // Predicated region
    $region74: #{tpu_custom_call.1} parent=1 // pred_check
      _
    $region75: #{tpu_custom_call.1} parent=1 // pred_check_branch
      %158 = sbr.rel (0) target = $region77
    $region76: #{tpu_custom_call.1} parent=1 // pred_region
      _
    $region77: #{tpu_custom_call.1} parent=1 // pred_fallthru
      _
    // Predicated region
    $region78: #{tpu_custom_call.1} parent=1 // pred_check
      _
    $region79: #{tpu_custom_call.1} parent=1 // pred_check_branch
      %160 = sbr.rel (0) target = $region81
    $region80: #{tpu_custom_call.1} parent=1 // pred_region
      _
    $region81: #{tpu_custom_call.1} parent=1 // pred_fallthru
      _
    // Predicated region
    $region82: #{tpu_custom_call.1} parent=1 // pred_check
      _
    $region83: #{tpu_custom_call.1} parent=1 // pred_check_branch
      %162 = sbr.rel (0) target = $region85
    $region84: #{tpu_custom_call.1} parent=1 // pred_region
      _
    $region85: #{tpu_custom_call.1} parent=1 // pred_fallthru
      _
    // Predicated region
    $region86: #{tpu_custom_call.1} parent=1 // pred_check
      _
    $region87: #{tpu_custom_call.1} parent=1 // pred_check_branch
      %164 = sbr.rel (0) target = $region89
    $region88: #{tpu_custom_call.1} parent=1 // pred_region
      _
    $region89: #{tpu_custom_call.1} parent=1 // pred_fallthru
      _
    // Predicated region
    $region90: #{tpu_custom_call.1} parent=1 // pred_check
      _
    $region91: #{tpu_custom_call.1} parent=1 // pred_check_branch
      %166 = sbr.rel (0) target = $region93
    $region92: #{tpu_custom_call.1} parent=1 // pred_region
      _
    $region93: #{tpu_custom_call.1} parent=1 // pred_fallthru
      _
    // Predicated region
    $region94: #{tpu_custom_call.1} parent=1 // pred_check
      _
    $region95: #{tpu_custom_call.1} parent=1 // pred_check_branch
      %168 = sbr.rel (0) target = $region97
    $region96: #{tpu_custom_call.1} parent=1 // pred_region
      %169 = dma.done [#allocation3], 128
    $region97: #{tpu_custom_call.1} parent=1 // pred_fallthru
      _
    // Predicated region
    $region98: #{tpu_custom_call.1} parent=1 // pred_check
      _
    $region99: #{tpu_custom_call.1} parent=1 // pred_check_branch
      %171 = sbr.rel (0) target = $region101
    $region100: #{tpu_custom_call.1} parent=1 // pred_region
      %172 = dma.done [#allocation6], 128
    $region101: #{tpu_custom_call.1} parent=1 // pred_fallthru
      _
    // Predicated region
    $region102: #{tpu_custom_call.1} parent=1 // pred_check
      _
    $region103: #{tpu_custom_call.1} parent=1 // pred_check_branch
      %174 = sbr.rel (0) target = $region105
    $region104: #{tpu_custom_call.1} parent=1 // pred_region
      %175 = dma.done [#allocation6], 512
    $region105: #{tpu_custom_call.1} parent=1 // pred_fallthru
      _
    // Predicated region
    $region106: #{tpu_custom_call.1} parent=1 // pred_check
      _
    $region107: #{tpu_custom_call.1} parent=1 // pred_check_branch
      %177 = sbr.rel (0) target = $region109
    $region108: #{tpu_custom_call.1} parent=1 // pred_region
      %178 = dma.done [#allocation9], 16
    $region109: #{tpu_custom_call.1} parent=1 // pred_fallthru
      _
    // Predicated region
    $region110: #{tpu_custom_call.1} parent=1 // pred_check
      _
    $region111: #{tpu_custom_call.1} parent=1 // pred_check_branch
      %180 = sbr.rel (0) target = $region113
    $region112: #{tpu_custom_call.1} parent=1 // pred_region
      %181 = dma.done [#allocation9], 64
    $region113: #{tpu_custom_call.1} parent=1 // pred_fallthru
      _
    // Predicated region
    $region114: #{tpu_custom_call.1} parent=1 // pred_check
      _
    $region115: #{tpu_custom_call.1} parent=1 // pred_check_branch
      %183 = sbr.rel (0) target = $region117
    $region116: #{tpu_custom_call.1} parent=1 // pred_region
      %184 = dma.done [#allocation12], 8192
    $region117: #{tpu_custom_call.1} parent=1 // pred_fallthru
      _
    // Predicated region
    $region118: #{tpu_custom_call.1} parent=1 // pred_check
      _
    $region119: #{tpu_custom_call.1} parent=1 // pred_check_branch
      %186 = sbr.rel (0) target = $region121
    $region120: #{tpu_custom_call.1} parent=1 // pred_region
      %187 = dma.done [#allocation12], 16
    $region121: #{tpu_custom_call.1} parent=1 // pred_fallthru
      _
    // Predicated region
    $region122: #{tpu_custom_call.1} parent=1 // pred_check
      _
    $region123: #{tpu_custom_call.1} parent=1 // pred_check_branch
      %189 = sbr.rel (0) target = $region125
    $region124: #{tpu_custom_call.1} parent=1 // pred_region
      %190 = dma.done [#allocation15], 16
    $region125: #{tpu_custom_call.1} parent=1 // pred_fallthru
      _
    // Predicated region
    $region126: #{tpu_custom_call.1} parent=1 // pred_check
      _
    $region127: #{tpu_custom_call.1} parent=1 // pred_check_branch
      %192 = sbr.rel (0) target = $region129
    $region128: #{tpu_custom_call.1} parent=1 // pred_region
      %193 = dma.done [#allocation15], 16
    $region129: #{tpu_custom_call.1} parent=1 // pred_fallthru
      _
    // Predicated region
    $region130: #{tpu_custom_call.1} parent=1 // pred_check
      _
    $region131: #{tpu_custom_call.1} parent=1 // pred_check_branch
      %195 = sbr.rel (0) target = $region133
    $region132: #{tpu_custom_call.1} parent=1 // pred_region
      %196 = dma.done [#allocation18], 2048
    $region133: #{tpu_custom_call.1} parent=1 // pred_fallthru
      _
    %v197 = vld [vmem:[#allocation2] sm:$0xff]
    %v198 = vld [vmem:[#allocation5] sm:$0x1f]
    %v199 = vld [vmem:[%s2] sm:$0x1]
    %v201 = vlaneseq
    %v202 = vshrl.u32 %v201, 7
    %v203 = vsub.s32 0, %v202
    %v204 = vrot.slane %v199, %v203
    %207 = vset.pattern.permute.xlu0 0
    %208 = vperm.xlu0 %207, %v197
    %v209 = vpop.permute.xlu0 %208
    %v211 = vlaneseq
    %v212 = vshrl.u32 %v211, 7
    %v213 = vsub.s32 0, %v212
    %v214 = vrot.slane %v198, %v213
    %v215 = vmul.f32 %v209, %v214
    %v216 = vadd.f32 %v204, %v215
    %217 = vset.pattern.permute.xlu0 1
    %218 = vperm.xlu0 %217, %v197
    %v219 = vpop.permute.xlu0 %218
    %v221 = vlaneseq
    %v222 = vshrl.u32 %v221, 7
    %v223 = vsub.s32 1, %v222
    %v224 = vrot.slane %v198, %v223
    %v225 = vmul.f32 %v219, %v224
    %v226 = vadd.f32 %v216, %v225
    %227 = vset.pattern.permute.xlu0 2
    %228 = vperm.xlu0 %227, %v197
    %v229 = vpop.permute.xlu0 %228
    %v231 = vlaneseq
    %v232 = vshrl.u32 %v231, 7
    %v233 = vsub.s32 2, %v232
    %v234 = vrot.slane %v198, %v233
    %v235 = vmul.f32 %v229, %v234
    %v236 = vadd.f32 %v226, %v235
    %237 = vset.pattern.permute.xlu0 3
    %238 = vperm.xlu0 %237, %v197
    %v239 = vpop.permute.xlu0 %238
    %v241 = vlaneseq
    %v242 = vshrl.u32 %v241, 7
    %v243 = vsub.s32 3, %v242
    %v244 = vrot.slane %v198, %v243
    %v245 = vmul.f32 %v239, %v244
    %v246 = vadd.f32 %v236, %v245
    %247 = vset.pattern.permute.xlu0 4
    %248 = vperm.xlu0 %247, %v197
    %v249 = vpop.permute.xlu0 %248
    %v251 = vlaneseq
    %v252 = vshrl.u32 %v251, 7
    %v253 = vsub.s32 4, %v252
    %v254 = vrot.slane %v198, %v253
    %v255 = vmul.f32 %v249, %v254
    %v256 = vadd.f32 %v246, %v255
    %v257 = vmax.f32 %v256, 0.0
    %v258 = vld [vmem:[#allocation7] sm:$0xff]
    %v259 = vld [vmem:[#allocation7 + $0x8] sm:$0xff]
    %v260 = vld [vmem:[#allocation7 + $0x10] sm:$0xff]
    %v261 = vld [vmem:[#allocation7 + $0x18] sm:$0xff]
    %v262 = vld [vmem:[#allocation8] sm:$0x1]
    %v264 = vlaneseq
    %v265 = vshrl.u32 %v264, 7
    %v266 = vsub.s32 0, %v265
    %v267 = vrot.slane %v262, %v266
    %vm269 = vcmask 261120
    %v271 = vsel %vm269, %v257, 0
    %273 = vmatprep.subr.mxu0 0.0
    %274 = vmatpush1.msra.mxu0 %v258
    %275 = vmatprep.subr.mxu0 0.0
    %276 = vmatpush1.msra.mxu0 %v259
    %277 = vmatprep.subr.mxu0 0.0
    %278 = vmatpush1.msra.mxu0 %v260
    %279 = vmatprep.subr.mxu0 0.0
    %280 = vmatpush1.msra.mxu0 %v261
    %281 = vmatprep.subr.mxu0 0.0
    %282 = vmatpush1.msra.mxu0 0.0
    %283 = vmatprep.subr.mxu0 0.0
    %284 = vmatpush1.msra.mxu0 0.0
    %285 = vmatprep.subr.mxu0 0.0
    %286 = vmatpush1.msra.mxu0 0.0
    %287 = vmatprep.subr.mxu0 0.0
    %288 = vmatpush1.msra.mxu0 0.0
    %289 = vmatprep.subr.mxu0 0.0
    %290 = vmatpush1.msra.mxu0 0.0
    %291 = vmatprep.subr.mxu0 0.0
    %292 = vmatpush1.msra.mxu0 0.0
    %293 = vmatprep.subr.mxu0 0.0
    %294 = vmatpush1.msra.mxu0 0.0
    %295 = vmatprep.subr.mxu0 0.0
    %296 = vmatpush1.msra.mxu0 0.0
    %297 = vmatprep.subr.mxu0 0.0
    %298 = vmatpush1.msra.mxu0 0.0
    %299 = vmatprep.subr.mxu0 0.0
    %300 = vmatpush1.msra.mxu0 0.0
    %301 = vmatprep.subr.mxu0 0.0
    %302 = vmatpush1.msra.mxu0 0.0
    %303 = vmatprep.subr.mxu0 0.0
    %304 = vmatpush1.msra.mxu0 0.0
    %305 = vmatprep.subr.mxu0 0.0
    %306 = vmatpush1.msra.mxu0 0.0
    %307 = vmatprep.subr.mxu0 0.0
    %308 = vmatpush1.msra.mxu0 0.0
    %309 = vmatprep.subr.mxu0 0.0
    %310 = vmatpush1.msra.mxu0 0.0
    %311 = vmatprep.subr.mxu0 0.0
    %312 = vmatpush1.msra.mxu0 0.0
    %313 = vmatprep.subr.mxu0 0.0
    %314 = vmatpush1.msra.mxu0 0.0
    %315 = vmatprep.subr.mxu0 0.0
    %316 = vmatpush1.msra.mxu0 0.0
    %317 = vmatprep.subr.mxu0 0.0
    %318 = vmatpush1.msra.mxu0 0.0
    %319 = vmatprep.subr.mxu0 0.0
    %320 = vmatpush1.msra.mxu0 0.0
    %321 = vmatprep.subr.mxu0 0.0
    %322 = vmatpush1.msra.mxu0 0.0
    %323 = vmatprep.subr.mxu0 0.0
    %324 = vmatpush1.msra.mxu0 0.0
    %325 = vmatprep.subr.mxu0 0.0
    %326 = vmatpush1.msra.mxu0 0.0
    %327 = vmatprep.subr.mxu0 0.0
    %328 = vmatpush1.msra.mxu0 0.0
    %329 = vmatprep.subr.mxu0 0.0
    %330 = vmatpush1.msra.mxu0 0.0
    %331 = vmatprep.subr.mxu0 0.0
    %332 = vmatpush1.msra.mxu0 0.0
    %333 = vmatprep.subr.mxu0 0.0
    %334 = vmatpush1.msra.mxu0 0.0
    %335 = vmatprep.subr.mxu0 0.0
    %336 = vmatpush1.msra.mxu0 0.0
    %337 = vmatprep.mubr.f32.mxu0 0.0
    %338 = vmatmul.mubr.f32.gmra.mrb[0].mxu0 %v271
    %v339 = vpop.f32.mrb[0].mxu0
    %v340 = vadd.f32 %v267, %v339
    %v341 = vpop.f32.mrb[0].mxu0
    %342 = vdwg.mxu0
    %v343 = vmax.f32 %v340, 0.0
    %v344 = vld [vmem:[%s5] sm:$0xff]
    %v345 = vld [vmem:[%s5 + $0x8] sm:$0xff]
    %v346 = vld [vmem:[%s5 + $0x10] sm:$0xff]
    %v347 = vld [vmem:[%s5 + $0x18] sm:$0xff]
    %v348 = vld [vmem:[%s5 + $0x20] sm:$0xff]
    %v349 = vld [vmem:[%s5 + $0x28] sm:$0xff]
    %v350 = vld [vmem:[%s5 + $0x30] sm:$0xff]
    %v351 = vld [vmem:[%s5 + $0x38] sm:$0xff]
    %v352 = vld [vmem:[%s5 + $0x40] sm:$0xff]
    %v353 = vld [vmem:[%s5 + $0x48] sm:$0xff]
    %v354 = vld [vmem:[%s5 + $0x50] sm:$0xff]
    %v355 = vld [vmem:[%s5 + $0x58] sm:$0xff]
    %v356 = vld [vmem:[%s5 + $0x60] sm:$0xff]
    %v357 = vld [vmem:[%s5 + $0x68] sm:$0xff]
    %v358 = vld [vmem:[%s5 + $0x70] sm:$0xff]
    %v359 = vld [vmem:[%s5 + $0x78] sm:$0xff]
    %v360 = vld [vmem:[%s5 + $0x80] sm:$0xff]
    %v361 = vld [vmem:[%s5 + $0x88] sm:$0xff]
    %v362 = vld [vmem:[%s5 + $0x90] sm:$0xff]
    %v363 = vld [vmem:[%s5 + $0x98] sm:$0xff]
    %v364 = vld [vmem:[%s5 + $0xa0] sm:$0xff]
    %v365 = vld [vmem:[%s5 + $0xa8] sm:$0xff]
    %v366 = vld [vmem:[%s5 + $0xb0] sm:$0xff]
    %v367 = vld [vmem:[%s5 + $0xb8] sm:$0xff]
    %v368 = vld [vmem:[%s5 + $0xc0] sm:$0xff]
    %v369 = vld [vmem:[%s5 + $0xc8] sm:$0xff]
    %v370 = vld [vmem:[%s5 + $0xd0] sm:$0xff]
    %v371 = vld [vmem:[%s5 + $0xd8] sm:$0xff]
    %v372 = vld [vmem:[%s5 + $0xe0] sm:$0xff]
    %v373 = vld [vmem:[%s5 + $0xe8] sm:$0xff]
    %v374 = vld [vmem:[%s5 + $0xf0] sm:$0xff]
    %v375 = vld [vmem:[%s5 + $0xf8] sm:$0xff]
    %v376 = vld [vmem:[%s5 + $0x100] sm:$0xff]
    %v377 = vld [vmem:[%s5 + $0x108] sm:$0xff]
    %v378 = vld [vmem:[%s5 + $0x110] sm:$0xff]
    %v379 = vld [vmem:[%s5 + $0x118] sm:$0xff]
    %v380 = vld [vmem:[%s5 + $0x120] sm:$0xff]
    %v381 = vld [vmem:[%s5 + $0x128] sm:$0xff]
    %v382 = vld [vmem:[%s5 + $0x130] sm:$0xff]
    %v383 = vld [vmem:[%s5 + $0x138] sm:$0xff]
    %v384 = vld [vmem:[%s5 + $0x140] sm:$0xff]
    %v385 = vld [vmem:[%s5 + $0x148] sm:$0xff]
    %v386 = vld [vmem:[%s5 + $0x150] sm:$0xff]
    %v387 = vld [vmem:[%s5 + $0x158] sm:$0xff]
    %v388 = vld [vmem:[%s5 + $0x160] sm:$0xff]
    %v389 = vld [vmem:[%s5 + $0x168] sm:$0xff]
    %v390 = vld [vmem:[%s5 + $0x170] sm:$0xff]
    %v391 = vld [vmem:[%s5 + $0x178] sm:$0xff]
    %v392 = vld [vmem:[%s5 + $0x180] sm:$0xff]
    %v393 = vld [vmem:[%s5 + $0x188] sm:$0xff]
    %v394 = vld [vmem:[%s5 + $0x190] sm:$0xff]
    %v395 = vld [vmem:[%s5 + $0x198] sm:$0xff]
    %v396 = vld [vmem:[%s5 + $0x1a0] sm:$0xff]
    %v397 = vld [vmem:[%s5 + $0x1a8] sm:$0xff]
    %v398 = vld [vmem:[%s5 + $0x1b0] sm:$0xff]
    %v399 = vld [vmem:[%s5 + $0x1b8] sm:$0xff]
    %v400 = vld [vmem:[%s5 + $0x1c0] sm:$0xff]
    %v401 = vld [vmem:[%s5 + $0x1c8] sm:$0xff]
    %v402 = vld [vmem:[%s5 + $0x1d0] sm:$0xff]
    %v403 = vld [vmem:[%s5 + $0x1d8] sm:$0xff]
    %v404 = vld [vmem:[%s5 + $0x1e0] sm:$0xff]
    %v405 = vld [vmem:[%s5 + $0x1e8] sm:$0xff]
    %v406 = vld [vmem:[%s5 + $0x1f0] sm:$0xff]
    %v407 = vld [vmem:[%s5 + $0x1f8] sm:$0xff]
    %v408 = vld [vmem:[#allocation10] sm:$0xf]
    %v410 = vlaneseq
    %v411 = vshrl.u32 %v410, 7
    %v412 = vsub.s32 0, %v411
    %v413 = vrot.slane %v408, %v412
    %v414 = vlaneseq
    %v415 = vshrl.u32 %v414, 7
    %v416 = vsub.s32 1, %v415
    %v417 = vrot.slane %v408, %v416
    %v418 = vlaneseq
    %v419 = vshrl.u32 %v418, 7
    %v420 = vsub.s32 2, %v419
    %v421 = vrot.slane %v408, %v420
    %v422 = vlaneseq
    %v423 = vshrl.u32 %v422, 7
    %v424 = vsub.s32 3, %v423
    %v425 = vrot.slane %v408, %v424
    %430 = vmatprep.subr.mxu0 %v345
    %431 = vmatpush1.msra.mxu0 %v344
    %432 = vmatprep.subr.mxu0 %v349
    %433 = vmatpush1.msra.mxu0 %v348
    %434 = vmatprep.subr.mxu0 %v353
    %435 = vmatpush1.msra.mxu0 %v352
    %436 = vmatprep.subr.mxu0 %v357
    %437 = vmatpush1.msra.mxu0 %v356
    %438 = vmatprep.subr.mxu0 %v361
    %439 = vmatpush1.msra.mxu0 %v360
    %440 = vmatprep.subr.mxu0 %v365
    %441 = vmatpush1.msra.mxu0 %v364
    %442 = vmatprep.subr.mxu0 %v369
    %443 = vmatpush1.msra.mxu0 %v368
    %444 = vmatprep.subr.mxu0 %v373
    %445 = vmatpush1.msra.mxu0 %v372
    %446 = vmatprep.subr.mxu0 %v377
    %447 = vmatpush1.msra.mxu0 %v376
    %448 = vmatprep.subr.mxu0 %v381
    %449 = vmatpush1.msra.mxu0 %v380
    %450 = vmatprep.subr.mxu0 %v385
    %451 = vmatpush1.msra.mxu0 %v384
    %452 = vmatprep.subr.mxu0 %v389
    %453 = vmatpush1.msra.mxu0 %v388
    %454 = vmatprep.subr.mxu0 %v393
    %455 = vmatpush1.msra.mxu0 %v392
    %456 = vmatprep.subr.mxu0 %v397
    %457 = vmatpush1.msra.mxu0 %v396
    %458 = vmatprep.subr.mxu0 %v401
    %459 = vmatpush1.msra.mxu0 %v400
    %460 = vmatprep.subr.mxu0 %v405
    %461 = vmatpush1.msra.mxu0 %v404
    %462 = vmatprep.subr.mxu0 0.0
    %463 = vmatpush1.msra.mxu0 0.0
    %464 = vmatprep.subr.mxu0 0.0
    %465 = vmatpush1.msra.mxu0 0.0
    %466 = vmatprep.subr.mxu0 0.0
    %467 = vmatpush1.msra.mxu0 0.0
    %468 = vmatprep.subr.mxu0 0.0
    %469 = vmatpush1.msra.mxu0 0.0
    %470 = vmatprep.subr.mxu0 0.0
    %471 = vmatpush1.msra.mxu0 0.0
    %472 = vmatprep.subr.mxu0 0.0
    %473 = vmatpush1.msra.mxu0 0.0
    %474 = vmatprep.subr.mxu0 0.0
    %475 = vmatpush1.msra.mxu0 0.0
    %476 = vmatprep.subr.mxu0 0.0
    %477 = vmatpush1.msra.mxu0 0.0
    %478 = vmatprep.subr.mxu0 0.0
    %479 = vmatpush1.msra.mxu0 0.0
    %480 = vmatprep.subr.mxu0 0.0
    %481 = vmatpush1.msra.mxu0 0.0
    %482 = vmatprep.subr.mxu0 0.0
    %483 = vmatpush1.msra.mxu0 0.0
    %484 = vmatprep.subr.mxu0 0.0
    %485 = vmatpush1.msra.mxu0 0.0
    %486 = vmatprep.subr.mxu0 0.0
    %487 = vmatpush1.msra.mxu0 0.0
    %488 = vmatprep.subr.mxu0 0.0
    %489 = vmatpush1.msra.mxu0 0.0
    %490 = vmatprep.subr.mxu0 0.0
    %491 = vmatpush1.msra.mxu0 0.0
    %492 = vmatprep.subr.mxu0 0.0
    %493 = vmatpush1.msra.mxu0 0.0
    %494 = vmatprep.mubr.f32.mxu0 0.0
    %495 = vmatmul.mubr.f32.gmra.mrb[0].mxu0 %v343
    %v496 = vpop.f32.mrb[0].mxu0
    %v497 = vadd.f32 %v413, %v496
    %v498 = vpop.f32.mrb[0].mxu0
    %v499 = vadd.f32 %v417, %v498
    %500 = vdwg.mxu0
    %501 = vmatprep.subr.mxu0 %v347
    %502 = vmatpush1.msra.mxu0 %v346
    %503 = vmatprep.subr.mxu0 %v351
    %504 = vmatpush1.msra.mxu0 %v350
    %505 = vmatprep.subr.mxu0 %v355
    %506 = vmatpush1.msra.mxu0 %v354
    %507 = vmatprep.subr.mxu0 %v359
    %508 = vmatpush1.msra.mxu0 %v358
    %509 = vmatprep.subr.mxu0 %v363
    %510 = vmatpush1.msra.mxu0 %v362
    %511 = vmatprep.subr.mxu0 %v367
    %512 = vmatpush1.msra.mxu0 %v366
    %513 = vmatprep.subr.mxu0 %v371
    %514 = vmatpush1.msra.mxu0 %v370
    %515 = vmatprep.subr.mxu0 %v375
    %516 = vmatpush1.msra.mxu0 %v374
    %517 = vmatprep.subr.mxu0 %v379
    %518 = vmatpush1.msra.mxu0 %v378
    %519 = vmatprep.subr.mxu0 %v383
    %520 = vmatpush1.msra.mxu0 %v382
    %521 = vmatprep.subr.mxu0 %v387
    %522 = vmatpush1.msra.mxu0 %v386
    %523 = vmatprep.subr.mxu0 %v391
    %524 = vmatpush1.msra.mxu0 %v390
    %525 = vmatprep.subr.mxu0 %v395
    %526 = vmatpush1.msra.mxu0 %v394
    %527 = vmatprep.subr.mxu0 %v399
    %528 = vmatpush1.msra.mxu0 %v398
    %529 = vmatprep.subr.mxu0 %v403
    %530 = vmatpush1.msra.mxu0 %v402
    %531 = vmatprep.subr.mxu0 %v407
    %532 = vmatpush1.msra.mxu0 %v406
    %533 = vmatprep.subr.mxu0 0.0
    %534 = vmatpush1.msra.mxu0 0.0
    %535 = vmatprep.subr.mxu0 0.0
    %536 = vmatpush1.msra.mxu0 0.0
    %537 = vmatprep.subr.mxu0 0.0
    %538 = vmatpush1.msra.mxu0 0.0
    %539 = vmatprep.subr.mxu0 0.0
    %540 = vmatpush1.msra.mxu0 0.0
    %541 = vmatprep.subr.mxu0 0.0
    %542 = vmatpush1.msra.mxu0 0.0
    %543 = vmatprep.subr.mxu0 0.0
    %544 = vmatpush1.msra.mxu0 0.0
    %545 = vmatprep.subr.mxu0 0.0
    %546 = vmatpush1.msra.mxu0 0.0
    %547 = vmatprep.subr.mxu0 0.0
    %548 = vmatpush1.msra.mxu0 0.0
    %549 = vmatprep.subr.mxu0 0.0
    %550 = vmatpush1.msra.mxu0 0.0
    %551 = vmatprep.subr.mxu0 0.0
    %552 = vmatpush1.msra.mxu0 0.0
    %553 = vmatprep.subr.mxu0 0.0
    %554 = vmatpush1.msra.mxu0 0.0
    %555 = vmatprep.subr.mxu0 0.0
    %556 = vmatpush1.msra.mxu0 0.0
    %557 = vmatprep.subr.mxu0 0.0
    %558 = vmatpush1.msra.mxu0 0.0
    %559 = vmatprep.subr.mxu0 0.0
    %560 = vmatpush1.msra.mxu0 0.0
    %561 = vmatprep.subr.mxu0 0.0
    %562 = vmatpush1.msra.mxu0 0.0
    %563 = vmatprep.subr.mxu0 0.0
    %564 = vmatpush1.msra.mxu0 0.0
    %565 = vmatprep.mubr.f32.mxu0 0.0
    %566 = vmatmul.mubr.f32.gmra.mrb[0].mxu0 %v343
    %v567 = vpop.f32.mrb[0].mxu0
    %v568 = vadd.f32 %v421, %v567
    %v569 = vpop.f32.mrb[0].mxu0
    %v570 = vadd.f32 %v425, %v569
    %571 = vdwg.mxu0
    %v572 = vmax.f32 %v497, 0.0
    %v573 = vmax.f32 %v499, 0.0
    %v574 = vmax.f32 %v568, 0.0
    %v575 = vmax.f32 %v570, 0.0
    %v576 = vld [vmem:[#allocation11] sm:$0xff]
    %v577 = vld [vmem:[#allocation11 + $0x8] sm:$0xff]
    %v578 = vld [vmem:[#allocation11 + $0x10] sm:$0xff]
    %v579 = vld [vmem:[#allocation11 + $0x18] sm:$0xff]
    %v580 = vld [vmem:[#allocation11 + $0x20] sm:$0xff]
    %v581 = vld [vmem:[#allocation11 + $0x28] sm:$0xff]
    %v582 = vld [vmem:[#allocation11 + $0x30] sm:$0xff]
    %v583 = vld [vmem:[#allocation11 + $0x38] sm:$0xff]
    %v584 = vld [vmem:[#allocation11 + $0x40] sm:$0xff]
    %v585 = vld [vmem:[#allocation11 + $0x48] sm:$0xff]
    %v586 = vld [vmem:[#allocation11 + $0x50] sm:$0xff]
    %v587 = vld [vmem:[#allocation11 + $0x58] sm:$0xff]
    %v588 = vld [vmem:[#allocation11 + $0x60] sm:$0xff]
    %v589 = vld [vmem:[#allocation11 + $0x68] sm:$0xff]
    %v590 = vld [vmem:[#allocation11 + $0x70] sm:$0xff]
    %v591 = vld [vmem:[#allocation11 + $0x78] sm:$0xff]
    %v592 = vld [vmem:[#allocation11 + $0x80] sm:$0xff]
    %v593 = vld [vmem:[#allocation11 + $0x88] sm:$0xff]
    %v594 = vld [vmem:[#allocation11 + $0x90] sm:$0xff]
    %v595 = vld [vmem:[#allocation11 + $0x98] sm:$0xff]
    %v596 = vld [vmem:[#allocation11 + $0xa0] sm:$0xff]
    %v597 = vld [vmem:[#allocation11 + $0xa8] sm:$0xff]
    %v598 = vld [vmem:[#allocation11 + $0xb0] sm:$0xff]
    %v599 = vld [vmem:[#allocation11 + $0xb8] sm:$0xff]
    %v600 = vld [vmem:[#allocation11 + $0xc0] sm:$0xff]
    %v601 = vld [vmem:[#allocation11 + $0xc8] sm:$0xff]
    %v602 = vld [vmem:[#allocation11 + $0xd0] sm:$0xff]
    %v603 = vld [vmem:[#allocation11 + $0xd8] sm:$0xff]
    %v604 = vld [vmem:[#allocation11 + $0xe0] sm:$0xff]
    %v605 = vld [vmem:[#allocation11 + $0xe8] sm:$0xff]
    %v606 = vld [vmem:[#allocation11 + $0xf0] sm:$0xff]
    %v607 = vld [vmem:[#allocation11 + $0xf8] sm:$0xff]
    %v608 = vld [vmem:[#allocation11 + $0x100] sm:$0xff]
    %v609 = vld [vmem:[#allocation11 + $0x108] sm:$0xff]
    %v610 = vld [vmem:[#allocation11 + $0x110] sm:$0xff]
    %v611 = vld [vmem:[#allocation11 + $0x118] sm:$0xff]
    %v612 = vld [vmem:[#allocation11 + $0x120] sm:$0xff]
    %v613 = vld [vmem:[#allocation11 + $0x128] sm:$0xff]
    %v614 = vld [vmem:[#allocation11 + $0x130] sm:$0xff]
    %v615 = vld [vmem:[#allocation11 + $0x138] sm:$0xff]
    %v616 = vld [vmem:[#allocation11 + $0x140] sm:$0xff]
    %v617 = vld [vmem:[#allocation11 + $0x148] sm:$0xff]
    %v618 = vld [vmem:[#allocation11 + $0x150] sm:$0xff]
    %v619 = vld [vmem:[#allocation11 + $0x158] sm:$0xff]
    %v620 = vld [vmem:[#allocation11 + $0x160] sm:$0xff]
    %v621 = vld [vmem:[#allocation11 + $0x168] sm:$0xff]
    %v622 = vld [vmem:[#allocation11 + $0x170] sm:$0xff]
    %v623 = vld [vmem:[#allocation11 + $0x178] sm:$0xff]
    %v624 = vld [vmem:[#allocation11 + $0x180] sm:$0xff]
    %v625 = vld [vmem:[#allocation11 + $0x188] sm:$0xff]
    %v626 = vld [vmem:[#allocation11 + $0x190] sm:$0xff]
    %v627 = vld [vmem:[#allocation11 + $0x198] sm:$0xff]
    %v628 = vld [vmem:[#allocation11 + $0x1a0] sm:$0xff]
    %v629 = vld [vmem:[#allocation11 + $0x1a8] sm:$0xff]
    %v630 = vld [vmem:[#allocation11 + $0x1b0] sm:$0xff]
    %v631 = vld [vmem:[#allocation11 + $0x1b8] sm:$0xff]
    %v632 = vld [vmem:[#allocation11 + $0x1c0] sm:$0xff]
    %v633 = vld [vmem:[#allocation11 + $0x1c8] sm:$0xff]
    %v634 = vld [vmem:[#allocation11 + $0x1d0] sm:$0xff]
    %v635 = vld [vmem:[#allocation11 + $0x1d8] sm:$0xff]
    %v636 = vld [vmem:[#allocation11 + $0x1e0] sm:$0xff]
    %v637 = vld [vmem:[#allocation11 + $0x1e8] sm:$0xff]
    %v638 = vld [vmem:[#allocation11 + $0x1f0] sm:$0xff]
    %v639 = vld [vmem:[#allocation11 + $0x1f8] sm:$0xff]
    %v640 = vld [vmem:[#allocation13] sm:$0x1]
    %v642 = vlaneseq
    %v643 = vshrl.u32 %v642, 7
    %v644 = vsub.s32 0, %v643
    %v645 = vrot.slane %v640, %v644
    %647 = vmatprep.subr.mxu0 0.0
    %648 = vmatpush1.msra.mxu0 %v576
    %649 = vmatprep.subr.mxu0 0.0
    %650 = vmatpush1.msra.mxu0 %v577
    %651 = vmatprep.subr.mxu0 0.0
    %652 = vmatpush1.msra.mxu0 %v578
    %653 = vmatprep.subr.mxu0 0.0
    %654 = vmatpush1.msra.mxu0 %v579
    %655 = vmatprep.subr.mxu0 0.0
    %656 = vmatpush1.msra.mxu0 %v580
    %657 = vmatprep.subr.mxu0 0.0
    %658 = vmatpush1.msra.mxu0 %v581
    %659 = vmatprep.subr.mxu0 0.0
    %660 = vmatpush1.msra.mxu0 %v582
    %661 = vmatprep.subr.mxu0 0.0
    %662 = vmatpush1.msra.mxu0 %v583
    %663 = vmatprep.subr.mxu0 0.0
    %664 = vmatpush1.msra.mxu0 %v584
    %665 = vmatprep.subr.mxu0 0.0
    %666 = vmatpush1.msra.mxu0 %v585
    %667 = vmatprep.subr.mxu0 0.0
    %668 = vmatpush1.msra.mxu0 %v586
    %669 = vmatprep.subr.mxu0 0.0
    %670 = vmatpush1.msra.mxu0 %v587
    %671 = vmatprep.subr.mxu0 0.0
    %672 = vmatpush1.msra.mxu0 %v588
    %673 = vmatprep.subr.mxu0 0.0
    %674 = vmatpush1.msra.mxu0 %v589
    %675 = vmatprep.subr.mxu0 0.0
    %676 = vmatpush1.msra.mxu0 %v590
    %677 = vmatprep.subr.mxu0 0.0
    %678 = vmatpush1.msra.mxu0 %v591
    %679 = vmatprep.subr.mxu0 0.0
    %680 = vmatpush1.msra.mxu0 %v592
    %681 = vmatprep.subr.mxu0 0.0
    %682 = vmatpush1.msra.mxu0 %v593
    %683 = vmatprep.subr.mxu0 0.0
    %684 = vmatpush1.msra.mxu0 %v594
    %685 = vmatprep.subr.mxu0 0.0
    %686 = vmatpush1.msra.mxu0 %v595
    %687 = vmatprep.subr.mxu0 0.0
    %688 = vmatpush1.msra.mxu0 %v596
    %689 = vmatprep.subr.mxu0 0.0
    %690 = vmatpush1.msra.mxu0 %v597
    %691 = vmatprep.subr.mxu0 0.0
    %692 = vmatpush1.msra.mxu0 %v598
    %693 = vmatprep.subr.mxu0 0.0
    %694 = vmatpush1.msra.mxu0 %v599
    %695 = vmatprep.subr.mxu0 0.0
    %696 = vmatpush1.msra.mxu0 %v600
    %697 = vmatprep.subr.mxu0 0.0
    %698 = vmatpush1.msra.mxu0 %v601
    %699 = vmatprep.subr.mxu0 0.0
    %700 = vmatpush1.msra.mxu0 %v602
    %701 = vmatprep.subr.mxu0 0.0
    %702 = vmatpush1.msra.mxu0 %v603
    %703 = vmatprep.subr.mxu0 0.0
    %704 = vmatpush1.msra.mxu0 %v604
    %705 = vmatprep.subr.mxu0 0.0
    %706 = vmatpush1.msra.mxu0 %v605
    %707 = vmatprep.subr.mxu0 0.0
    %708 = vmatpush1.msra.mxu0 %v606
    %709 = vmatprep.subr.mxu0 0.0
    %710 = vmatpush1.msra.mxu0 %v607
    %711 = vmatprep.mubr.f32.mxu0 %v573
    %712 = vmatmul.mubr.f32.gmra.mrb[0].mxu0 %v572
    %v713 = vpop.f32.mrb[0].mxu0
    %v714 = vadd.f32 %v645, %v713
    %v715 = vpop.f32.mrb[0].mxu0
    %716 = vdwg.mxu0
    %717 = vmatprep.subr.mxu0 0.0
    %718 = vmatpush1.msra.mxu0 %v608
    %719 = vmatprep.subr.mxu0 0.0
    %720 = vmatpush1.msra.mxu0 %v609
    %721 = vmatprep.subr.mxu0 0.0
    %722 = vmatpush1.msra.mxu0 %v610
    %723 = vmatprep.subr.mxu0 0.0
    %724 = vmatpush1.msra.mxu0 %v611
    %725 = vmatprep.subr.mxu0 0.0
    %726 = vmatpush1.msra.mxu0 %v612
    %727 = vmatprep.subr.mxu0 0.0
    %728 = vmatpush1.msra.mxu0 %v613
    %729 = vmatprep.subr.mxu0 0.0
    %730 = vmatpush1.msra.mxu0 %v614
    %731 = vmatprep.subr.mxu0 0.0
    %732 = vmatpush1.msra.mxu0 %v615
    %733 = vmatprep.subr.mxu0 0.0
    %734 = vmatpush1.msra.mxu0 %v616
    %735 = vmatprep.subr.mxu0 0.0
    %736 = vmatpush1.msra.mxu0 %v617
    %737 = vmatprep.subr.mxu0 0.0
    %738 = vmatpush1.msra.mxu0 %v618
    %739 = vmatprep.subr.mxu0 0.0
    %740 = vmatpush1.msra.mxu0 %v619
    %741 = vmatprep.subr.mxu0 0.0
    %742 = vmatpush1.msra.mxu0 %v620
    %743 = vmatprep.subr.mxu0 0.0
    %744 = vmatpush1.msra.mxu0 %v621
    %745 = vmatprep.subr.mxu0 0.0
    %746 = vmatpush1.msra.mxu0 %v622
    %747 = vmatprep.subr.mxu0 0.0
    %748 = vmatpush1.msra.mxu0 %v623
    %749 = vmatprep.subr.mxu0 0.0
    %750 = vmatpush1.msra.mxu0 %v624
    %751 = vmatprep.subr.mxu0 0.0
    %752 = vmatpush1.msra.mxu0 %v625
    %753 = vmatprep.subr.mxu0 0.0
    %754 = vmatpush1.msra.mxu0 %v626
    %755 = vmatprep.subr.mxu0 0.0
    %756 = vmatpush1.msra.mxu0 %v627
    %757 = vmatprep.subr.mxu0 0.0
    %758 = vmatpush1.msra.mxu0 %v628
    %759 = vmatprep.subr.mxu0 0.0
    %760 = vmatpush1.msra.mxu0 %v629
    %761 = vmatprep.subr.mxu0 0.0
    %762 = vmatpush1.msra.mxu0 %v630
    %763 = vmatprep.subr.mxu0 0.0
    %764 = vmatpush1.msra.mxu0 %v631
    %765 = vmatprep.subr.mxu0 0.0
    %766 = vmatpush1.msra.mxu0 %v632
    %767 = vmatprep.subr.mxu0 0.0
    %768 = vmatpush1.msra.mxu0 %v633
    %769 = vmatprep.subr.mxu0 0.0
    %770 = vmatpush1.msra.mxu0 %v634
    %771 = vmatprep.subr.mxu0 0.0
    %772 = vmatpush1.msra.mxu0 %v635
    %773 = vmatprep.subr.mxu0 0.0
    %774 = vmatpush1.msra.mxu0 %v636
    %775 = vmatprep.subr.mxu0 0.0
    %776 = vmatpush1.msra.mxu0 %v637
    %777 = vmatprep.subr.mxu0 0.0
    %778 = vmatpush1.msra.mxu0 %v638
    %779 = vmatprep.subr.mxu0 0.0
    %780 = vmatpush1.msra.mxu0 %v639
    %781 = vmatprep.mubr.f32.mxu0 %v575
    %782 = vmatmul.mubr.f32.gmra.mrb[0].mxu0 %v574
    %v783 = vpop.f32.mrb[0].mxu0
    %v784 = vadd.f32 %v714, %v783
    %v785 = vpop.f32.mrb[0].mxu0
    %786 = vdwg.mxu0
    %v787 = vmax.f32 %v784, 0.0
    %v788 = vld [vmem:[%s9] sm:$0xff]
    %v789 = vld [vmem:[%s9 + $0x8] sm:$0xff]
    %v790 = vld [vmem:[%s9 + $0x10] sm:$0xff]
    %v791 = vld [vmem:[%s9 + $0x18] sm:$0xff]
    %v792 = vld [vmem:[%s9 + $0x20] sm:$0xff]
    %v793 = vld [vmem:[%s9 + $0x28] sm:$0xff]
    %v794 = vld [vmem:[%s9 + $0x30] sm:$0xff]
    %v795 = vld [vmem:[%s9 + $0x38] sm:$0xff]
    %v796 = vld [vmem:[%s9 + $0x40] sm:$0xff]
    %v797 = vld [vmem:[%s9 + $0x48] sm:$0xff]
    %v798 = vld [vmem:[%s9 + $0x50] sm:$0xff]
    %v799 = vld [vmem:[%s9 + $0x58] sm:$0xff]
    %v800 = vld [vmem:[%s9 + $0x60] sm:$0xff]
    %v801 = vld [vmem:[%s9 + $0x68] sm:$0xff]
    %v802 = vld [vmem:[%s9 + $0x70] sm:$0xff]
    %v803 = vld [vmem:[%s9 + $0x78] sm:$0xff]
    %v804 = vld [vmem:[#allocation14] sm:$0x1]
    %v806 = vlaneseq
    %v807 = vshrl.u32 %v806, 7
    %v808 = vsub.s32 0, %v807
    %v809 = vrot.slane %v804, %v808
    %811 = vmatprep.subr.mxu0 0.0
    %812 = vmatpush1.msra.mxu0 %v788
    %813 = vmatprep.subr.mxu0 0.0
    %814 = vmatpush1.msra.mxu0 %v789
    %815 = vmatprep.subr.mxu0 0.0
    %816 = vmatpush1.msra.mxu0 %v790
    %817 = vmatprep.subr.mxu0 0.0
    %818 = vmatpush1.msra.mxu0 %v791
    %819 = vmatprep.subr.mxu0 0.0
    %820 = vmatpush1.msra.mxu0 %v792
    %821 = vmatprep.subr.mxu0 0.0
    %822 = vmatpush1.msra.mxu0 %v793
    %823 = vmatprep.subr.mxu0 0.0
    %824 = vmatpush1.msra.mxu0 %v794
    %825 = vmatprep.subr.mxu0 0.0
    %826 = vmatpush1.msra.mxu0 %v795
    %827 = vmatprep.subr.mxu0 0.0
    %828 = vmatpush1.msra.mxu0 %v796
    %829 = vmatprep.subr.mxu0 0.0
    %830 = vmatpush1.msra.mxu0 %v797
    %831 = vmatprep.subr.mxu0 0.0
    %832 = vmatpush1.msra.mxu0 %v798
    %833 = vmatprep.subr.mxu0 0.0
    %834 = vmatpush1.msra.mxu0 %v799
    %835 = vmatprep.subr.mxu0 0.0
    %836 = vmatpush1.msra.mxu0 %v800
    %837 = vmatprep.subr.mxu0 0.0
    %838 = vmatpush1.msra.mxu0 %v801
    %839 = vmatprep.subr.mxu0 0.0
    %840 = vmatpush1.msra.mxu0 %v802
    %841 = vmatprep.subr.mxu0 0.0
    %842 = vmatpush1.msra.mxu0 %v803
    %843 = vmatprep.subr.mxu0 0.0
    %844 = vmatpush1.msra.mxu0 0.0
    %845 = vmatprep.subr.mxu0 0.0
    %846 = vmatpush1.msra.mxu0 0.0
    %847 = vmatprep.subr.mxu0 0.0
    %848 = vmatpush1.msra.mxu0 0.0
    %849 = vmatprep.subr.mxu0 0.0
    %850 = vmatpush1.msra.mxu0 0.0
    %851 = vmatprep.subr.mxu0 0.0
    %852 = vmatpush1.msra.mxu0 0.0
    %853 = vmatprep.subr.mxu0 0.0
    %854 = vmatpush1.msra.mxu0 0.0
    %855 = vmatprep.subr.mxu0 0.0
    %856 = vmatpush1.msra.mxu0 0.0
    %857 = vmatprep.subr.mxu0 0.0
    %858 = vmatpush1.msra.mxu0 0.0
    %859 = vmatprep.subr.mxu0 0.0
    %860 = vmatpush1.msra.mxu0 0.0
    %861 = vmatprep.subr.mxu0 0.0
    %862 = vmatpush1.msra.mxu0 0.0
    %863 = vmatprep.subr.mxu0 0.0
    %864 = vmatpush1.msra.mxu0 0.0
    %865 = vmatprep.subr.mxu0 0.0
    %866 = vmatpush1.msra.mxu0 0.0
    %867 = vmatprep.subr.mxu0 0.0
    %868 = vmatpush1.msra.mxu0 0.0
    %869 = vmatprep.subr.mxu0 0.0
    %870 = vmatpush1.msra.mxu0 0.0
    %871 = vmatprep.subr.mxu0 0.0
    %872 = vmatpush1.msra.mxu0 0.0
    %873 = vmatprep.subr.mxu0 0.0
    %874 = vmatpush1.msra.mxu0 0.0
    %875 = vmatprep.mubr.f32.mxu0 0.0
    %876 = vmatmul.mubr.f32.gmra.mrb[0].mxu0 %v787
    %v877 = vpop.f32.mrb[0].mxu0
    %v878 = vadd.f32 %v809, %v877
    %v879 = vpop.f32.mrb[0].mxu0
    %880 = vdwg.mxu0
    %v881 = vmax.f32 %v878, 0.0
    %v882 = vld [vmem:[%s11] sm:$0xff]
    %v883 = vld [vmem:[%s11 + $0x8] sm:$0xff]
    %v884 = vld [vmem:[%s11 + $0x10] sm:$0xff]
    %v885 = vld [vmem:[%s11 + $0x18] sm:$0xff]
    %v886 = vld [vmem:[#allocation16] sm:$0x1]
    %v888 = vlaneseq
    %v889 = vshrl.u32 %v888, 7
    %v890 = vsub.s32 0, %v889
    %v891 = vrot.slane %v886, %v890
    %v894 = vsel %vm269, %v881, 0
    %896 = vmatprep.subr.mxu0 0.0
    %897 = vmatpush1.msra.mxu0 %v882
    %898 = vmatprep.subr.mxu0 0.0
    %899 = vmatpush1.msra.mxu0 %v883
    %900 = vmatprep.subr.mxu0 0.0
    %901 = vmatpush1.msra.mxu0 %v884
    %902 = vmatprep.subr.mxu0 0.0
    %903 = vmatpush1.msra.mxu0 %v885
    %904 = vmatprep.subr.mxu0 0.0
    %905 = vmatpush1.msra.mxu0 0.0
    %906 = vmatprep.subr.mxu0 0.0
    %907 = vmatpush1.msra.mxu0 0.0
    %908 = vmatprep.subr.mxu0 0.0
    %909 = vmatpush1.msra.mxu0 0.0
    %910 = vmatprep.subr.mxu0 0.0
    %911 = vmatpush1.msra.mxu0 0.0
    %912 = vmatprep.subr.mxu0 0.0
    %913 = vmatpush1.msra.mxu0 0.0
    %914 = vmatprep.subr.mxu0 0.0
    %915 = vmatpush1.msra.mxu0 0.0
    %916 = vmatprep.subr.mxu0 0.0
    %917 = vmatpush1.msra.mxu0 0.0
    %918 = vmatprep.subr.mxu0 0.0
    %919 = vmatpush1.msra.mxu0 0.0
    %920 = vmatprep.subr.mxu0 0.0
    %921 = vmatpush1.msra.mxu0 0.0
    %922 = vmatprep.subr.mxu0 0.0
    %923 = vmatpush1.msra.mxu0 0.0
    %924 = vmatprep.subr.mxu0 0.0
    %925 = vmatpush1.msra.mxu0 0.0
    %926 = vmatprep.subr.mxu0 0.0
    %927 = vmatpush1.msra.mxu0 0.0
    %928 = vmatprep.subr.mxu0 0.0
    %929 = vmatpush1.msra.mxu0 0.0
    %930 = vmatprep.subr.mxu0 0.0
    %931 = vmatpush1.msra.mxu0 0.0
    %932 = vmatprep.subr.mxu0 0.0
    %933 = vmatpush1.msra.mxu0 0.0
    %934 = vmatprep.subr.mxu0 0.0
    %935 = vmatpush1.msra.mxu0 0.0
    %936 = vmatprep.subr.mxu0 0.0
    %937 = vmatpush1.msra.mxu0 0.0
    %938 = vmatprep.subr.mxu0 0.0
    %939 = vmatpush1.msra.mxu0 0.0
    %940 = vmatprep.subr.mxu0 0.0
    %941 = vmatpush1.msra.mxu0 0.0
    %942 = vmatprep.subr.mxu0 0.0
    %943 = vmatpush1.msra.mxu0 0.0
    %944 = vmatprep.subr.mxu0 0.0
    %945 = vmatpush1.msra.mxu0 0.0
    %946 = vmatprep.subr.mxu0 0.0
    %947 = vmatpush1.msra.mxu0 0.0
    %948 = vmatprep.subr.mxu0 0.0
    %949 = vmatpush1.msra.mxu0 0.0
    %950 = vmatprep.subr.mxu0 0.0
    %951 = vmatpush1.msra.mxu0 0.0
    %952 = vmatprep.subr.mxu0 0.0
    %953 = vmatpush1.msra.mxu0 0.0
    %954 = vmatprep.subr.mxu0 0.0
    %955 = vmatpush1.msra.mxu0 0.0
    %956 = vmatprep.subr.mxu0 0.0
    %957 = vmatpush1.msra.mxu0 0.0
    %958 = vmatprep.subr.mxu0 0.0
    %959 = vmatpush1.msra.mxu0 0.0
    %960 = vmatprep.mubr.f32.mxu0 0.0
    %961 = vmatmul.mubr.f32.gmra.mrb[0].mxu0 %v894
    %v962 = vpop.f32.mrb[0].mxu0
    %v963 = vadd.f32 %v891, %v962
    %v964 = vpop.f32.mrb[0].mxu0
    %965 = vdwg.mxu0
    %v966 = vmax.f32 %v963, 0.0
    %v967 = vld [vmem:[%s13] sm:$0xff]
    %v968 = vld [vmem:[%s13 + $0x8] sm:$0xff]
    %v969 = vld [vmem:[%s14] sm:$0x1]
    %v971 = vlaneseq
    %v972 = vshrl.u32 %v971, 7
    %v973 = vsub.s32 0, %v972
    %v974 = vrot.slane %v969, %v973
    %vm976 = vcmask 130048
    %v978 = vsel %vm976, %v966, 0
    %980 = vmatprep.subr.mxu0 0.0
    %981 = vmatpush1.msra.mxu0 %v967
    %982 = vmatprep.subr.mxu0 0.0
    %983 = vmatpush1.msra.mxu0 %v968
    %984 = vmatprep.subr.mxu0 0.0
    %985 = vmatpush1.msra.mxu0 0.0
    %986 = vmatprep.subr.mxu0 0.0
    %987 = vmatpush1.msra.mxu0 0.0
    %988 = vmatprep.subr.mxu0 0.0
    %989 = vmatpush1.msra.mxu0 0.0
    %990 = vmatprep.subr.mxu0 0.0
    %991 = vmatpush1.msra.mxu0 0.0
    %992 = vmatprep.subr.mxu0 0.0
    %993 = vmatpush1.msra.mxu0 0.0
    %994 = vmatprep.subr.mxu0 0.0
    %995 = vmatpush1.msra.mxu0 0.0
    %996 = vmatprep.subr.mxu0 0.0
    %997 = vmatpush1.msra.mxu0 0.0
    %998 = vmatprep.subr.mxu0 0.0
    %999 = vmatpush1.msra.mxu0 0.0
    %1000 = vmatprep.subr.mxu0 0.0
    %1001 = vmatpush1.msra.mxu0 0.0
    %1002 = vmatprep.subr.mxu0 0.0
    %1003 = vmatpush1.msra.mxu0 0.0
    %1004 = vmatprep.subr.mxu0 0.0
    %1005 = vmatpush1.msra.mxu0 0.0
    %1006 = vmatprep.subr.mxu0 0.0
    %1007 = vmatpush1.msra.mxu0 0.0
    %1008 = vmatprep.subr.mxu0 0.0
    %1009 = vmatpush1.msra.mxu0 0.0
    %1010 = vmatprep.subr.mxu0 0.0
    %1011 = vmatpush1.msra.mxu0 0.0
    %1012 = vmatprep.subr.mxu0 0.0
    %1013 = vmatpush1.msra.mxu0 0.0
    %1014 = vmatprep.subr.mxu0 0.0
    %1015 = vmatpush1.msra.mxu0 0.0
    %1016 = vmatprep.subr.mxu0 0.0
    %1017 = vmatpush1.msra.mxu0 0.0
    %1018 = vmatprep.subr.mxu0 0.0
    %1019 = vmatpush1.msra.mxu0 0.0
    %1020 = vmatprep.subr.mxu0 0.0
    %1021 = vmatpush1.msra.mxu0 0.0
    %1022 = vmatprep.subr.mxu0 0.0
    %1023 = vmatpush1.msra.mxu0 0.0
    %1024 = vmatprep.subr.mxu0 0.0
    %1025 = vmatpush1.msra.mxu0 0.0
    %1026 = vmatprep.subr.mxu0 0.0
    %1027 = vmatpush1.msra.mxu0 0.0
    %1028 = vmatprep.subr.mxu0 0.0
    %1029 = vmatpush1.msra.mxu0 0.0
    %1030 = vmatprep.subr.mxu0 0.0
    %1031 = vmatpush1.msra.mxu0 0.0
    %1032 = vmatprep.subr.mxu0 0.0
    %1033 = vmatpush1.msra.mxu0 0.0
    %1034 = vmatprep.subr.mxu0 0.0
    %1035 = vmatpush1.msra.mxu0 0.0
    %1036 = vmatprep.subr.mxu0 0.0
    %1037 = vmatpush1.msra.mxu0 0.0
    %1038 = vmatprep.subr.mxu0 0.0
    %1039 = vmatpush1.msra.mxu0 0.0
    %1040 = vmatprep.subr.mxu0 0.0
    %1041 = vmatpush1.msra.mxu0 0.0
    %1042 = vmatprep.subr.mxu0 0.0
    %1043 = vmatpush1.msra.mxu0 0.0
    %1044 = vmatprep.mubr.f32.mxu0 0.0
    %1045 = vmatmul.mubr.f32.gmra.mrb[0].mxu0 %v978
    %v1046 = vpop.f32.mrb[0].mxu0
    %v1047 = vadd.f32 %v974, %v1046
    %v1048 = vpop.f32.mrb[0].mxu0
    %1049 = vdwg.mxu0
    %v1050 = vmax.f32 %v1047, 0.0
    %v1051 = vld [vmem:[#allocation17] sm:$0xff]
    %v1052 = vld [vmem:[#allocation17 + $0x8] sm:$0xff]
    %v1053 = vld [vmem:[#allocation17 + $0x10] sm:$0xff]
    %v1054 = vld [vmem:[#allocation17 + $0x18] sm:$0xff]
    %v1055 = vld [vmem:[#allocation17 + $0x20] sm:$0xff]
    %v1056 = vld [vmem:[#allocation17 + $0x28] sm:$0xff]
    %v1057 = vld [vmem:[#allocation17 + $0x30] sm:$0xff]
    %v1058 = vld [vmem:[#allocation17 + $0x38] sm:$0xff]
    %v1059 = vld [vmem:[#allocation17 + $0x40] sm:$0xff]
    %v1060 = vld [vmem:[#allocation17 + $0x48] sm:$0xff]
    %v1061 = vld [vmem:[#allocation17 + $0x50] sm:$0xff]
    %v1062 = vld [vmem:[#allocation17 + $0x58] sm:$0xff]
    %v1063 = vld [vmem:[#allocation17 + $0x60] sm:$0xff]
    %v1064 = vld [vmem:[#allocation17 + $0x68] sm:$0xff]
    %v1065 = vld [vmem:[#allocation17 + $0x70] sm:$0xff]
    %v1066 = vld [vmem:[#allocation17 + $0x78] sm:$0xff]
    %v1067 = vld [vmem:[%s16] sm:$0x3]
    %v1069 = vlaneseq
    %v1070 = vshrl.u32 %v1069, 7
    %v1071 = vsub.s32 0, %v1070
    %v1072 = vrot.slane %v1067, %v1071
    %v1073 = vlaneseq
    %v1074 = vshrl.u32 %v1073, 7
    %v1075 = vsub.s32 1, %v1074
    %v1076 = vrot.slane %v1067, %v1075
    %vm1079 = vcmask 523264
    %v1081 = vsel %vm1079, %v1050, 0
    %1083 = vmatprep.subr.mxu0 %v1052
    %1084 = vmatpush1.msra.mxu0 %v1051
    %1085 = vmatprep.subr.mxu0 %v1054
    %1086 = vmatpush1.msra.mxu0 %v1053
    %1087 = vmatprep.subr.mxu0 %v1056
    %1088 = vmatpush1.msra.mxu0 %v1055
    %1089 = vmatprep.subr.mxu0 %v1058
    %1090 = vmatpush1.msra.mxu0 %v1057
    %1091 = vmatprep.subr.mxu0 %v1060
    %1092 = vmatpush1.msra.mxu0 %v1059
    %1093 = vmatprep.subr.mxu0 %v1062
    %1094 = vmatpush1.msra.mxu0 %v1061
    %1095 = vmatprep.subr.mxu0 %v1064
    %1096 = vmatpush1.msra.mxu0 %v1063
    %1097 = vmatprep.subr.mxu0 %v1066
    %1098 = vmatpush1.msra.mxu0 %v1065
    %1099 = vmatprep.subr.mxu0 0.0
    %1100 = vmatpush1.msra.mxu0 0.0
    %1101 = vmatprep.subr.mxu0 0.0
    %1102 = vmatpush1.msra.mxu0 0.0
    %1103 = vmatprep.subr.mxu0 0.0
    %1104 = vmatpush1.msra.mxu0 0.0
    %1105 = vmatprep.subr.mxu0 0.0
    %1106 = vmatpush1.msra.mxu0 0.0
    %1107 = vmatprep.subr.mxu0 0.0
    %1108 = vmatpush1.msra.mxu0 0.0
    %1109 = vmatprep.subr.mxu0 0.0
    %1110 = vmatpush1.msra.mxu0 0.0
    %1111 = vmatprep.subr.mxu0 0.0
    %1112 = vmatpush1.msra.mxu0 0.0
    %1113 = vmatprep.subr.mxu0 0.0
    %1114 = vmatpush1.msra.mxu0 0.0
    %1115 = vmatprep.subr.mxu0 0.0
    %1116 = vmatpush1.msra.mxu0 0.0
    %1117 = vmatprep.subr.mxu0 0.0
    %1118 = vmatpush1.msra.mxu0 0.0
    %1119 = vmatprep.subr.mxu0 0.0
    %1120 = vmatpush1.msra.mxu0 0.0
    %1121 = vmatprep.subr.mxu0 0.0
    %1122 = vmatpush1.msra.mxu0 0.0
    %1123 = vmatprep.subr.mxu0 0.0
    %1124 = vmatpush1.msra.mxu0 0.0
    %1125 = vmatprep.subr.mxu0 0.0
    %1126 = vmatpush1.msra.mxu0 0.0
    %1127 = vmatprep.subr.mxu0 0.0
    %1128 = vmatpush1.msra.mxu0 0.0
    %1129 = vmatprep.subr.mxu0 0.0
    %1130 = vmatpush1.msra.mxu0 0.0
    %1131 = vmatprep.subr.mxu0 0.0
    %1132 = vmatpush1.msra.mxu0 0.0
    %1133 = vmatprep.subr.mxu0 0.0
    %1134 = vmatpush1.msra.mxu0 0.0
    %1135 = vmatprep.subr.mxu0 0.0
    %1136 = vmatpush1.msra.mxu0 0.0
    %1137 = vmatprep.subr.mxu0 0.0
    %1138 = vmatpush1.msra.mxu0 0.0
    %1139 = vmatprep.subr.mxu0 0.0
    %1140 = vmatpush1.msra.mxu0 0.0
    %1141 = vmatprep.subr.mxu0 0.0
    %1142 = vmatpush1.msra.mxu0 0.0
    %1143 = vmatprep.subr.mxu0 0.0
    %1144 = vmatpush1.msra.mxu0 0.0
    %1145 = vmatprep.subr.mxu0 0.0
    %1146 = vmatpush1.msra.mxu0 0.0
    %1147 = vmatprep.mubr.f32.mxu0 0.0
    %1148 = vmatmul.mubr.f32.gmra.mrb[0].mxu0 %v1081
    %v1149 = vpop.f32.mrb[0].mxu0
    %v1150 = vadd.f32 %v1072, %v1149
    %v1151 = vpop.f32.mrb[0].mxu0
    %v1152 = vadd.f32 %v1076, %v1151
    %1153 = vdwg.mxu0
    %v1154 = vmax.f32 %v1150, 0.0
    %v1155 = vmax.f32 %v1152, 0.0
    %v1156 = vld [vmem:[%s17] sm:$0xff]
    %v1157 = vld [vmem:[%s17 + $0x8] sm:$0xff]
    %v1158 = vld [vmem:[%s17 + $0x10] sm:$0xff]
    %v1159 = vld [vmem:[%s17 + $0x18] sm:$0xff]
    %v1160 = vld [vmem:[%s17 + $0x20] sm:$0xff]
    %v1161 = vld [vmem:[%s17 + $0x28] sm:$0xff]
    %v1162 = vld [vmem:[%s17 + $0x30] sm:$0xff]
    %v1163 = vld [vmem:[%s17 + $0x38] sm:$0xff]
    %v1164 = vld [vmem:[%s17 + $0x40] sm:$0xff]
    %v1165 = vld [vmem:[%s17 + $0x48] sm:$0xff]
    %v1166 = vld [vmem:[%s17 + $0x50] sm:$0xff]
    %v1167 = vld [vmem:[%s17 + $0x58] sm:$0xff]
    %v1168 = vld [vmem:[%s17 + $0x60] sm:$0xff]
    %v1169 = vld [vmem:[%s17 + $0x68] sm:$0xff]
    %v1170 = vld [vmem:[%s17 + $0x70] sm:$0xff]
    %v1171 = vld [vmem:[%s17 + $0x78] sm:$0xff]
    %v1172 = vld [vmem:[%s17 + $0x80] sm:$0xff]
    %v1173 = vld [vmem:[%s17 + $0x88] sm:$0xff]
    %v1174 = vld [vmem:[%s17 + $0x90] sm:$0xff]
    %v1175 = vld [vmem:[%s17 + $0x98] sm:$0xff]
    %v1176 = vld [vmem:[%s17 + $0xa0] sm:$0xff]
    %v1177 = vld [vmem:[%s17 + $0xa8] sm:$0xff]
    %v1178 = vld [vmem:[%s17 + $0xb0] sm:$0xff]
    %v1179 = vld [vmem:[%s17 + $0xb8] sm:$0xff]
    %v1180 = vld [vmem:[%s17 + $0xc0] sm:$0xff]
    %v1181 = vld [vmem:[%s17 + $0xc8] sm:$0xff]
    %v1182 = vld [vmem:[%s17 + $0xd0] sm:$0xff]
    %v1183 = vld [vmem:[%s17 + $0xd8] sm:$0xff]
    %v1184 = vld [vmem:[%s17 + $0xe0] sm:$0xff]
    %v1185 = vld [vmem:[%s17 + $0xe8] sm:$0xff]
    %v1186 = vld [vmem:[%s17 + $0xf0] sm:$0xff]
    %v1187 = vld [vmem:[%s17 + $0xf8] sm:$0xff]
    %v1188 = vld [vmem:[%s18] sm:$0x1]
    %v1190 = vlaneseq
    %v1191 = vshrl.u32 %v1190, 7
    %v1192 = vsub.s32 0, %v1191
    %v1193 = vrot.slane %v1188, %v1192
    %1195 = vmatprep.subr.mxu0 0.0
    %1196 = vmatpush1.msra.mxu0 %v1156
    %1197 = vmatprep.subr.mxu0 0.0
    %1198 = vmatpush1.msra.mxu0 %v1157
    %1199 = vmatprep.subr.mxu0 0.0
    %1200 = vmatpush1.msra.mxu0 %v1158
    %1201 = vmatprep.subr.mxu0 0.0
    %1202 = vmatpush1.msra.mxu0 %v1159
    %1203 = vmatprep.subr.mxu0 0.0
    %1204 = vmatpush1.msra.mxu0 %v1160
    %1205 = vmatprep.subr.mxu0 0.0
    %1206 = vmatpush1.msra.mxu0 %v1161
    %1207 = vmatprep.subr.mxu0 0.0
    %1208 = vmatpush1.msra.mxu0 %v1162
    %1209 = vmatprep.subr.mxu0 0.0
    %1210 = vmatpush1.msra.mxu0 %v1163
    %1211 = vmatprep.subr.mxu0 0.0
    %1212 = vmatpush1.msra.mxu0 %v1164
    %1213 = vmatprep.subr.mxu0 0.0
    %1214 = vmatpush1.msra.mxu0 %v1165
    %1215 = vmatprep.subr.mxu0 0.0
    %1216 = vmatpush1.msra.mxu0 %v1166
    %1217 = vmatprep.subr.mxu0 0.0
    %1218 = vmatpush1.msra.mxu0 %v1167
    %1219 = vmatprep.subr.mxu0 0.0
    %1220 = vmatpush1.msra.mxu0 %v1168
    %1221 = vmatprep.subr.mxu0 0.0
    %1222 = vmatpush1.msra.mxu0 %v1169
    %1223 = vmatprep.subr.mxu0 0.0
    %1224 = vmatpush1.msra.mxu0 %v1170
    %1225 = vmatprep.subr.mxu0 0.0
    %1226 = vmatpush1.msra.mxu0 %v1171
    %1227 = vmatprep.subr.mxu0 0.0
    %1228 = vmatpush1.msra.mxu0 %v1172
    %1229 = vmatprep.subr.mxu0 0.0
    %1230 = vmatpush1.msra.mxu0 %v1173
    %1231 = vmatprep.subr.mxu0 0.0
    %1232 = vmatpush1.msra.mxu0 %v1174
    %1233 = vmatprep.subr.mxu0 0.0
    %1234 = vmatpush1.msra.mxu0 %v1175
    %1235 = vmatprep.subr.mxu0 0.0
    %1236 = vmatpush1.msra.mxu0 %v1176
    %1237 = vmatprep.subr.mxu0 0.0
    %1238 = vmatpush1.msra.mxu0 %v1177
    %1239 = vmatprep.subr.mxu0 0.0
    %1240 = vmatpush1.msra.mxu0 %v1178
    %1241 = vmatprep.subr.mxu0 0.0
    %1242 = vmatpush1.msra.mxu0 %v1179
    %1243 = vmatprep.subr.mxu0 0.0
    %1244 = vmatpush1.msra.mxu0 %v1180
    %1245 = vmatprep.subr.mxu0 0.0
    %1246 = vmatpush1.msra.mxu0 %v1181
    %1247 = vmatprep.subr.mxu0 0.0
    %1248 = vmatpush1.msra.mxu0 %v1182
    %1249 = vmatprep.subr.mxu0 0.0
    %1250 = vmatpush1.msra.mxu0 %v1183
    %1251 = vmatprep.subr.mxu0 0.0
    %1252 = vmatpush1.msra.mxu0 %v1184
    %1253 = vmatprep.subr.mxu0 0.0
    %1254 = vmatpush1.msra.mxu0 %v1185
    %1255 = vmatprep.subr.mxu0 0.0
    %1256 = vmatpush1.msra.mxu0 %v1186
    %1257 = vmatprep.subr.mxu0 0.0
    %1258 = vmatpush1.msra.mxu0 %v1187
    %1259 = vmatprep.mubr.f32.mxu0 %v1155
    %1260 = vmatmul.mubr.f32.gmra.mrb[0].mxu0 %v1154
    %v1261 = vpop.f32.mrb[0].mxu0
    %v1262 = vadd.f32 %v1193, %v1261
    %v1263 = vpop.f32.mrb[0].mxu0
    %1264 = vdwg.mxu0
    %v1265 = vmax.f32 %v1262, 0.0
    %v1266 = vld [vmem:[%s19] sm:$0xff]
    %v1267 = vld [vmem:[%s19 + $0x8] sm:$0xff]
    %v1268 = vld [vmem:[%s19 + $0x10] sm:$0xff]
    %v1269 = vld [vmem:[%s19 + $0x18] sm:$0xff]
    %v1270 = vld [vmem:[%s19 + $0x20] sm:$0xff]
    %v1271 = vld [vmem:[%s19 + $0x28] sm:$0xff]
    %v1272 = vld [vmem:[%s19 + $0x30] sm:$0xff]
    %v1273 = vld [vmem:[%s19 + $0x38] sm:$0xff]
    %v1274 = vld [vmem:[%s20] sm:$0x1]
    %v1276 = vlaneseq
    %v1277 = vshrl.u32 %v1276, 7
    %v1278 = vsub.s32 0, %v1277
    %v1279 = vrot.slane %v1274, %v1278
    %v1282 = vsel %vm1079, %v1265, 0
    %1284 = vmatprep.subr.mxu0 0.0
    %1285 = vmatpush1.msra.mxu0 %v1266
    %1286 = vmatprep.subr.mxu0 0.0
    %1287 = vmatpush1.msra.mxu0 %v1267
    %1288 = vmatprep.subr.mxu0 0.0
    %1289 = vmatpush1.msra.mxu0 %v1268
    %1290 = vmatprep.subr.mxu0 0.0
    %1291 = vmatpush1.msra.mxu0 %v1269
    %1292 = vmatprep.subr.mxu0 0.0
    %1293 = vmatpush1.msra.mxu0 %v1270
    %1294 = vmatprep.subr.mxu0 0.0
    %1295 = vmatpush1.msra.mxu0 %v1271
    %1296 = vmatprep.subr.mxu0 0.0
    %1297 = vmatpush1.msra.mxu0 %v1272
    %1298 = vmatprep.subr.mxu0 0.0
    %1299 = vmatpush1.msra.mxu0 %v1273
    %1300 = vmatprep.subr.mxu0 0.0
    %1301 = vmatpush1.msra.mxu0 0.0
    %1302 = vmatprep.subr.mxu0 0.0
    %1303 = vmatpush1.msra.mxu0 0.0
    %1304 = vmatprep.subr.mxu0 0.0
    %1305 = vmatpush1.msra.mxu0 0.0
    %1306 = vmatprep.subr.mxu0 0.0
    %1307 = vmatpush1.msra.mxu0 0.0
    %1308 = vmatprep.subr.mxu0 0.0
    %1309 = vmatpush1.msra.mxu0 0.0
    %1310 = vmatprep.subr.mxu0 0.0
    %1311 = vmatpush1.msra.mxu0 0.0
    %1312 = vmatprep.subr.mxu0 0.0
    %1313 = vmatpush1.msra.mxu0 0.0
    %1314 = vmatprep.subr.mxu0 0.0
    %1315 = vmatpush1.msra.mxu0 0.0
    %1316 = vmatprep.subr.mxu0 0.0
    %1317 = vmatpush1.msra.mxu0 0.0
    %1318 = vmatprep.subr.mxu0 0.0
    %1319 = vmatpush1.msra.mxu0 0.0
    %1320 = vmatprep.subr.mxu0 0.0
    %1321 = vmatpush1.msra.mxu0 0.0
    %1322 = vmatprep.subr.mxu0 0.0
    %1323 = vmatpush1.msra.mxu0 0.0
    %1324 = vmatprep.subr.mxu0 0.0
    %1325 = vmatpush1.msra.mxu0 0.0
    %1326 = vmatprep.subr.mxu0 0.0
    %1327 = vmatpush1.msra.mxu0 0.0
    %1328 = vmatprep.subr.mxu0 0.0
    %1329 = vmatpush1.msra.mxu0 0.0
    %1330 = vmatprep.subr.mxu0 0.0
    %1331 = vmatpush1.msra.mxu0 0.0
    %1332 = vmatprep.subr.mxu0 0.0
    %1333 = vmatpush1.msra.mxu0 0.0
    %1334 = vmatprep.subr.mxu0 0.0
    %1335 = vmatpush1.msra.mxu0 0.0
    %1336 = vmatprep.subr.mxu0 0.0
    %1337 = vmatpush1.msra.mxu0 0.0
    %1338 = vmatprep.subr.mxu0 0.0
    %1339 = vmatpush1.msra.mxu0 0.0
    %1340 = vmatprep.subr.mxu0 0.0
    %1341 = vmatpush1.msra.mxu0 0.0
    %1342 = vmatprep.subr.mxu0 0.0
    %1343 = vmatpush1.msra.mxu0 0.0
    %1344 = vmatprep.subr.mxu0 0.0
    %1345 = vmatpush1.msra.mxu0 0.0
    %1346 = vmatprep.subr.mxu0 0.0
    %1347 = vmatpush1.msra.mxu0 0.0
    %1348 = vmatprep.mubr.f32.mxu0 0.0
    %1349 = vmatmul.mubr.f32.gmra.mrb[0].mxu0 %v1282
    %v1350 = vpop.f32.mrb[0].mxu0
    %v1351 = vadd.f32 %v1279, %v1350
    %v1352 = vpop.f32.mrb[0].mxu0
    %1353 = vdwg.mxu0
    %v1354 = vmax.f32 %v1351, 0.0
    %v1355 = vld [vmem:[%s21] sm:$0xff]
    %v1356 = vld [vmem:[%s21 + $0x8] sm:$0xff]
    %v1357 = vld [vmem:[%s22] sm:$0x1]
    %v1359 = vlaneseq
    %v1360 = vshrl.u32 %v1359, 7
    %v1361 = vsub.s32 0, %v1360
    %v1362 = vrot.slane %v1357, %v1361
    %v1365 = vsel %vm976, %v1354, 0
    %1367 = vmatprep.subr.mxu0 0.0
    %1368 = vmatpush1.msra.mxu0 %v1355
    %1369 = vmatprep.subr.mxu0 0.0
    %1370 = vmatpush1.msra.mxu0 %v1356
    %1371 = vmatprep.subr.mxu0 0.0
    %1372 = vmatpush1.msra.mxu0 0.0
    %1373 = vmatprep.subr.mxu0 0.0
    %1374 = vmatpush1.msra.mxu0 0.0
    %1375 = vmatprep.subr.mxu0 0.0
    %1376 = vmatpush1.msra.mxu0 0.0
    %1377 = vmatprep.subr.mxu0 0.0
    %1378 = vmatpush1.msra.mxu0 0.0
    %1379 = vmatprep.subr.mxu0 0.0
    %1380 = vmatpush1.msra.mxu0 0.0
    %1381 = vmatprep.subr.mxu0 0.0
    %1382 = vmatpush1.msra.mxu0 0.0
    %1383 = vmatprep.subr.mxu0 0.0
    %1384 = vmatpush1.msra.mxu0 0.0
    %1385 = vmatprep.subr.mxu0 0.0
    %1386 = vmatpush1.msra.mxu0 0.0
    %1387 = vmatprep.subr.mxu0 0.0
    %1388 = vmatpush1.msra.mxu0 0.0
    %1389 = vmatprep.subr.mxu0 0.0
    %1390 = vmatpush1.msra.mxu0 0.0
    %1391 = vmatprep.subr.mxu0 0.0
    %1392 = vmatpush1.msra.mxu0 0.0
    %1393 = vmatprep.subr.mxu0 0.0
    %1394 = vmatpush1.msra.mxu0 0.0
    %1395 = vmatprep.subr.mxu0 0.0
    %1396 = vmatpush1.msra.mxu0 0.0
    %1397 = vmatprep.subr.mxu0 0.0
    %1398 = vmatpush1.msra.mxu0 0.0
    %1399 = vmatprep.subr.mxu0 0.0
    %1400 = vmatpush1.msra.mxu0 0.0
    %1401 = vmatprep.subr.mxu0 0.0
    %1402 = vmatpush1.msra.mxu0 0.0
    %1403 = vmatprep.subr.mxu0 0.0
    %1404 = vmatpush1.msra.mxu0 0.0
    %1405 = vmatprep.subr.mxu0 0.0
    %1406 = vmatpush1.msra.mxu0 0.0
    %1407 = vmatprep.subr.mxu0 0.0
    %1408 = vmatpush1.msra.mxu0 0.0
    %1409 = vmatprep.subr.mxu0 0.0
    %1410 = vmatpush1.msra.mxu0 0.0
    %1411 = vmatprep.subr.mxu0 0.0
    %1412 = vmatpush1.msra.mxu0 0.0
    %1413 = vmatprep.subr.mxu0 0.0
    %1414 = vmatpush1.msra.mxu0 0.0
    %1415 = vmatprep.subr.mxu0 0.0
    %1416 = vmatpush1.msra.mxu0 0.0
    %1417 = vmatprep.subr.mxu0 0.0
    %1418 = vmatpush1.msra.mxu0 0.0
    %1419 = vmatprep.subr.mxu0 0.0
    %1420 = vmatpush1.msra.mxu0 0.0
    %1421 = vmatprep.subr.mxu0 0.0
    %1422 = vmatpush1.msra.mxu0 0.0
    %1423 = vmatprep.subr.mxu0 0.0
    %1424 = vmatpush1.msra.mxu0 0.0
    %1425 = vmatprep.subr.mxu0 0.0
    %1426 = vmatpush1.msra.mxu0 0.0
    %1427 = vmatprep.subr.mxu0 0.0
    %1428 = vmatpush1.msra.mxu0 0.0
    %1429 = vmatprep.subr.mxu0 0.0
    %1430 = vmatpush1.msra.mxu0 0.0
    %1431 = vmatprep.mubr.f32.mxu0 0.0
    %1432 = vmatmul.mubr.f32.gmra.mrb[0].mxu0 %v1365
    %v1433 = vpop.f32.mrb[0].mxu0
    %v1434 = vadd.f32 %v1362, %v1433
    %v1435 = vpop.f32.mrb[0].mxu0
    %1436 = vdwg.mxu0
    %1437 = vst [vmem:[#allocation19] sm:$0xff] %v1434
    // Predicated region
    $region134: #{tpu_custom_call.1} parent=1 // pred_check
      _
    $region135: #{tpu_custom_call.1} parent=1 // pred_check_branch
      %1439 = sbr.rel (0) target = $region137
    $region136: #{tpu_custom_call.1} parent=1 // pred_region
      %s1441 = ssub.s32 128, 128
      %1442 = vsyncadd [#allocation4], %s1441
      %s1444 = sshll.u32 [#allocation19], 4
      %s1445 = int_to_ptr.vmem [resolvable:$true] %s1444
      %1447 = dma.vmem_to_hbm [thread:$0]  %s1445, 128, %s23, [#allocation4]
    $region137: #{tpu_custom_call.1} parent=1 // pred_fallthru
      _
    // Predicated region
    $region138: #{tpu_custom_call.1} parent=1 // pred_check
      _
    $region139: #{tpu_custom_call.1} parent=1 // pred_check_branch
      %1449 = sbr.rel (0) target = $region141
    $region140: #{tpu_custom_call.1} parent=1 // pred_region
      %1450 = dma.done [#allocation4], 128
    $region141: #{tpu_custom_call.1} parent=1 // pred_fallthru
      _
    %1451 = vsyncpa [#allocation3], 1
    %1452 = vsyncpa [#allocation6], 1
    %1453 = vsyncpa [#allocation9], 1
    %1454 = vsyncpa [#allocation12], 1
    %1455 = vsyncpa [#allocation15], 1
    %1456 = vsyncpa [#allocation18], 1
    %1457 = vsyncpa [#allocation4], 1

</llo_original>
